<compile_context>
chip_gen: v5e
topology: v5e:2x2
jax: 0.10.0
libtpu: 0.0.40
codegen_flags: <defaults>
</compile_context>

<pallas_src>
import jax
import jax.numpy as jnp
from jax.experimental import pallas as pl
from jax.experimental.pallas import tpu as pltpu

B, C, H, W = 2, 3, 28, 28          # small synthetic shapes (patch-aligned)
PATCH = 14                          # DinoV2 ViT-S/14 patch size
T = (H // PATCH) * (W // PATCH)     # tokens per image
BT = B * T                          # total tokens (8 -> clean sublane split)
P = C * PATCH * PATCH               # flattened patch pixels (588)
P_PAD = 640                         # 588 padded up to a multiple of 128
D = 128                             # embed dim (ViT-S uses 384; lane-dense stand-in)
HID = 4 * D                         # MLP hidden dim (ViT uses 4x)
NLAYERS = 2                         # number of synthetic transformer MLP blocks
LOSS_WEIGHT = 1.0
# FelixExtractor schedule: weight_ini=1.0, weight_end=1.0, curve=1 -> all 1.0
LAYER_WEIGHTS = tuple(1.0 for _ in range(2 * NLAYERS))

# TODO(synk): transforms.Resize((224, 224)) (bilinear resample), the pretrained
# DinoV2 weights, and the full attention blocks / cls token are not reproduced;
# inputs are assumed patch-aligned and only Linear-hook features are modeled.


def _gelu(x):
    # TODO(synk): tanh-approx GELU (PyTorch nn.GELU default is erf); kept on the EUP.
    return 0.5 * x * (1.0 + jnp.tanh(0.7978845608028654 * (x + 0.044715 * x * x * x)))


def dinov2_loss_kernel(patch_ref, wp_ref, posb_ref,
                       w1a_ref, b1a_ref, w2a_ref, b2a_ref,
                       w1b_ref, b1b_ref, w2b_ref, b2b_ref,
                       out_ref):
    f32 = jnp.float32
    bf16 = jnp.bfloat16

    # Normalize is folded into wp/posb host-side; patches arrive pre-cast to bf16.
    # Patch embedding on the STACKED [x; gt] operand: one MXU weight push.
    h = jnp.dot(patch_ref[...], wp_ref[...],
                preferred_element_type=f32) + posb_ref[...]     # [2*BT, D] f32

    # Running |diff| accumulators; single reduce + scale at the very end.
    acc_hid = jnp.zeros((BT, HID), f32)
    acc_d = jnp.zeros((BT, D), f32)

    layer_refs = ((w1a_ref, b1a_ref, w2a_ref, b2a_ref),
                  (w1b_ref, b1b_ref, w2b_ref, b2b_ref))

    widx = 0
    for (w1_ref, b1_ref, w2_ref, b2_ref) in layer_refs:
        # hooked nn.Linear #1 (fc1) -- one stacked matmul for x and gt
        f1 = jnp.dot(h.astype(bf16), w1_ref[...],
                     preferred_element_type=f32) + b1_ref[...]  # [2*BT, HID] f32
        d1 = jnp.abs(f1[:BT] - f1[BT:])                         # sublane-aligned split
        w = LAYER_WEIGHTS[widx]
        acc_hid = acc_hid + (d1 if w == 1.0 else w * d1)        # skip mul for unit weight
        widx += 1

        a = _gelu(f1)                                            # f32 elementwise (EUP tanh)

        # hooked nn.Linear #2 (fc2)
        f2 = jnp.dot(a.astype(bf16), w2_ref[...],
                     preferred_element_type=f32) + b2_ref[...]   # [2*BT, D] f32
        d2 = jnp.abs(f2[:BT] - f2[BT:])
        w = LAYER_WEIGHTS[widx]
        acc_d = acc_d + (d2 if w == 1.0 else w * d2)
        widx += 1

        # residual (applies identically to both stacked halves)
        h = h + f2

    # One reduction per accumulator; mean (1/N) and loss_weight applied on scalars.
    loss = (jnp.sum(acc_hid) * (1.0 / float(BT * HID))
            + jnp.sum(acc_d) * (1.0 / float(BT * D))) * LOSS_WEIGHT
    out_ref[0, 0] = loss


def extract_patches(img):
    """NCHW image -> [B*T, P_PAD] flattened non-overlapping 14x14 patches (lane-padded, bf16)."""
    b, c, h, w = img.shape
    gh, gw = h // PATCH, w // PATCH
    p = img.reshape(b, c, gh, PATCH, gw, PATCH)
    p = p.transpose(0, 2, 4, 1, 3, 5)  # B, gh, gw, C, ph, pw
    flat = p.reshape(b * gh * gw, c * PATCH * PATCH)
    return jnp.pad(flat, ((0, 0), (0, P_PAD - P))).astype(jnp.bfloat16)


def init_params(key):
    """Deterministic synthetic weights with Normalize folded into the patch embed."""
    ks = jax.random.split(key, 2 + 2 * NLAYERS)

    def lin(k, shape, fan_in):
        return jax.random.normal(k, shape, jnp.float32) / jnp.sqrt(jnp.float32(fan_in))

    wp = lin(ks[0], (P, D), P)                 # raw patch-embed weight
    bp = jnp.zeros((1, D), jnp.float32)
    pos = 0.02 * jax.random.normal(ks[1], (T, D), jnp.float32)

    # Fold Normalize: (x-0.5)/0.5 = 2x - 1  =>  wp' = 2*wp,  bias' = bp - ones@wp
    wp_folded = 2.0 * wp
    bias_corr = bp - jnp.sum(wp, axis=0, keepdims=True)          # [1, D]
    wp_pad = jnp.pad(wp_folded, ((0, P_PAD - P), (0, 0))).astype(jnp.bfloat16)

    # bias + positional embedding, tiled for the stacked [x; gt] rows: [2*B*T, D]
    posb = jnp.tile(pos, (B, 1)) + bias_corr                     # [B*T, D]
    posb = jnp.tile(posb, (2, 1))                                # [2*B*T, D]

    params = [wp_pad, posb]
    ki = 2
    for _ in range(NLAYERS):
        w1 = lin(ks[ki], (D, HID), D).astype(jnp.bfloat16); ki += 1
        b1 = jnp.zeros((1, HID), jnp.float32)
        w2 = lin(ks[ki], (HID, D), HID).astype(jnp.bfloat16); ki += 1
        b2 = jnp.zeros((1, D), jnp.float32)
        params += [w1, b1, w2, b2]
    return params


def dinov2_loss(x, gt, params):
    # Stack x and gt patches along the sublane (row) axis: one matmul per weight.
    patches = jnp.concatenate([extract_patches(x), extract_patches(gt)], axis=0)
    inputs = [patches] + list(params)

    rows = 2 * BT
    matmul_flops = (2 * rows * P_PAD * D
                    + NLAYERS * (2 * rows * D * HID + 2 * rows * HID * D))
    transcendentals = NLAYERS * rows * HID                      # one tanh per GELU elem
    bytes_accessed = sum(int(a.size) * a.dtype.itemsize for a in inputs) + 4

    vmem_spec = pl.BlockSpec(memory_space=pltpu.MemorySpace.VMEM)
    out = pl.pallas_call(
        dinov2_loss_kernel,
        out_shape=jax.ShapeDtypeStruct((1, 1), jnp.float32),
        in_specs=[vmem_spec] * len(inputs),
        out_specs=pl.BlockSpec(memory_space=pltpu.MemorySpace.SMEM),
        cost_estimate=pl.CostEstimate(
            flops=int(matmul_flops),
            transcendentals=int(transcendentals),
            bytes_accessed=int(bytes_accessed)),
    )(*inputs)
    return out[0, 0]


if __name__ == "__main__":
    key = jax.random.PRNGKey(0)
    kx, kg, kp = jax.random.split(key, 3)
    x = jax.random.uniform(kx, (B, C, H, W), jnp.float32)
    gt = jax.random.uniform(kg, (B, C, H, W), jnp.float32)
    params = init_params(kp)

    loss = dinov2_loss(x, gt, params)
    jax.block_until_ready(loss)
    print("KERNEL_OK")
</pallas_src>

<mosaic_0001>
module attributes {stable_mosaic.version = 11 : i64} {
  func.func @dinov2_loss_kernel(%arg0: memref<16x640xbf16, #tpu.memory_space<vmem>>, %arg1: memref<640x128xbf16, #tpu.memory_space<vmem>>, %arg2: memref<16x128xf32, #tpu.memory_space<vmem>>, %arg3: memref<128x512xbf16, #tpu.memory_space<vmem>>, %arg4: memref<1x512xf32, #tpu.memory_space<vmem>>, %arg5: memref<512x128xbf16, #tpu.memory_space<vmem>>, %arg6: memref<1x128xf32, #tpu.memory_space<vmem>>, %arg7: memref<128x512xbf16, #tpu.memory_space<vmem>>, %arg8: memref<1x512xf32, #tpu.memory_space<vmem>>, %arg9: memref<512x128xbf16, #tpu.memory_space<vmem>>, %arg10: memref<1x128xf32, #tpu.memory_space<vmem>>, %arg11: memref<1x1xf32, #tpu.memory_space<smem>>) attributes {dimension_semantics = [], scalar_prefetch = 0 : i64, scratch_operands = 0 : i64, tpu.core_type = #tpu.core_type<tc>} {
    %c0 = arith.constant 0 : index
    %c0_0 = arith.constant 0 : index
    %0 = vector.load %arg0[%c0, %c0_0] : memref<16x640xbf16, #tpu.memory_space<vmem>>, vector<16x640xbf16>
    %c0_1 = arith.constant 0 : index
    %c0_2 = arith.constant 0 : index
    %1 = vector.load %arg1[%c0_1, %c0_2] : memref<640x128xbf16, #tpu.memory_space<vmem>>, vector<640x128xbf16>
    %cst = arith.constant dense<0.000000e+00> : vector<16x128xf32>
    %2 = tpu.matmul %0, %1, %cst {dimension_numbers = #tpu.dot_dimension_numbers<[1], [0], [0], [1], [0, 0, 1, 1], [], []>} : vector<16x640xbf16>, vector<640x128xbf16>, vector<16x128xf32> -> vector<16x128xf32>
    %c0_3 = arith.constant 0 : index
    %c0_4 = arith.constant 0 : index
    %3 = vector.load %arg2[%c0_3, %c0_4] : memref<16x128xf32, #tpu.memory_space<vmem>>, vector<16x128xf32>
    %4 = arith.addf %2, %3 : vector<16x128xf32>
    %cst_5 = arith.constant 0.000000e+00 : f32
    %5 = vector.broadcast %cst_5 : f32 to vector<8x512xf32>
    %cst_6 = arith.constant 0.000000e+00 : f32
    %6 = vector.broadcast %cst_6 : f32 to vector<8x128xf32>
    %7 = arith.truncf %4 : vector<16x128xf32> to vector<16x128xbf16>
    %c0_7 = arith.constant 0 : index
    %c0_8 = arith.constant 0 : index
    %8 = vector.load %arg3[%c0_7, %c0_8] : memref<128x512xbf16, #tpu.memory_space<vmem>>, vector<128x512xbf16>
    %cst_9 = arith.constant dense<0.000000e+00> : vector<16x512xf32>
    %9 = tpu.matmul %7, %8, %cst_9 {dimension_numbers = #tpu.dot_dimension_numbers<[1], [0], [0], [1], [0, 0, 1, 1], [], []>} : vector<16x128xbf16>, vector<128x512xbf16>, vector<16x512xf32> -> vector<16x512xf32>
    %c0_10 = arith.constant 0 : index
    %c0_11 = arith.constant 0 : index
    %10 = vector.load %arg4[%c0_10, %c0_11] : memref<1x512xf32, #tpu.memory_space<vmem>>, vector<1x512xf32>
    %11 = vector.broadcast %10 : vector<1x512xf32> to vector<16x512xf32>
    %12 = arith.addf %9, %11 : vector<16x512xf32>
    %13 = vector.extract_strided_slice %12 {offsets = [0, 0], sizes = [8, 512], strides = [1, 1]} : vector<16x512xf32> to vector<8x512xf32>
    %14 = vector.extract_strided_slice %12 {offsets = [8, 0], sizes = [8, 512], strides = [1, 1]} : vector<16x512xf32> to vector<8x512xf32>
    %15 = arith.subf %13, %14 : vector<8x512xf32>
    %16 = math.absf %15 : vector<8x512xf32>
    %17 = arith.addf %5, %16 : vector<8x512xf32>
    %cst_12 = arith.constant 5.000000e-01 : f32
    %18 = vector.broadcast %cst_12 : f32 to vector<16x512xf32>
    %19 = arith.mulf %18, %12 : vector<16x512xf32>
    %cst_13 = arith.constant 4.471500e-02 : f32
    %20 = vector.broadcast %cst_13 : f32 to vector<16x512xf32>
    %21 = arith.mulf %20, %12 : vector<16x512xf32>
    %22 = arith.mulf %21, %12 : vector<16x512xf32>
    %23 = arith.mulf %22, %12 : vector<16x512xf32>
    %24 = arith.addf %12, %23 : vector<16x512xf32>
    %cst_14 = arith.constant 0.797884583 : f32
    %25 = vector.broadcast %cst_14 : f32 to vector<16x512xf32>
    %26 = arith.mulf %25, %24 : vector<16x512xf32>
    %27 = math.tanh %26 : vector<16x512xf32>
    %cst_15 = arith.constant 1.000000e+00 : f32
    %28 = vector.broadcast %cst_15 : f32 to vector<16x512xf32>
    %29 = arith.addf %28, %27 : vector<16x512xf32>
    %30 = arith.mulf %19, %29 : vector<16x512xf32>
    %31 = arith.truncf %30 : vector<16x512xf32> to vector<16x512xbf16>
    %c0_16 = arith.constant 0 : index
    %c0_17 = arith.constant 0 : index
    %32 = vector.load %arg5[%c0_16, %c0_17] : memref<512x128xbf16, #tpu.memory_space<vmem>>, vector<512x128xbf16>
    %cst_18 = arith.constant dense<0.000000e+00> : vector<16x128xf32>
    %33 = tpu.matmul %31, %32, %cst_18 {dimension_numbers = #tpu.dot_dimension_numbers<[1], [0], [0], [1], [0, 0, 1, 1], [], []>} : vector<16x512xbf16>, vector<512x128xbf16>, vector<16x128xf32> -> vector<16x128xf32>
    %c0_19 = arith.constant 0 : index
    %c0_20 = arith.constant 0 : index
    %34 = vector.load %arg6[%c0_19, %c0_20] : memref<1x128xf32, #tpu.memory_space<vmem>>, vector<1x128xf32>
    %35 = vector.broadcast %34 : vector<1x128xf32> to vector<16x128xf32>
    %36 = arith.addf %33, %35 : vector<16x128xf32>
    %37 = vector.extract_strided_slice %36 {offsets = [0, 0], sizes = [8, 128], strides = [1, 1]} : vector<16x128xf32> to vector<8x128xf32>
    %38 = vector.extract_strided_slice %36 {offsets = [8, 0], sizes = [8, 128], strides = [1, 1]} : vector<16x128xf32> to vector<8x128xf32>
    %39 = arith.subf %37, %38 : vector<8x128xf32>
    %40 = math.absf %39 : vector<8x128xf32>
    %41 = arith.addf %6, %40 : vector<8x128xf32>
    %42 = arith.addf %4, %36 : vector<16x128xf32>
    %43 = arith.truncf %42 : vector<16x128xf32> to vector<16x128xbf16>
    %c0_21 = arith.constant 0 : index
    %c0_22 = arith.constant 0 : index
    %44 = vector.load %arg7[%c0_21, %c0_22] : memref<128x512xbf16, #tpu.memory_space<vmem>>, vector<128x512xbf16>
    %cst_23 = arith.constant dense<0.000000e+00> : vector<16x512xf32>
    %45 = tpu.matmul %43, %44, %cst_23 {dimension_numbers = #tpu.dot_dimension_numbers<[1], [0], [0], [1], [0, 0, 1, 1], [], []>} : vector<16x128xbf16>, vector<128x512xbf16>, vector<16x512xf32> -> vector<16x512xf32>
    %c0_24 = arith.constant 0 : index
    %c0_25 = arith.constant 0 : index
    %46 = vector.load %arg8[%c0_24, %c0_25] : memref<1x512xf32, #tpu.memory_space<vmem>>, vector<1x512xf32>
    %47 = vector.broadcast %46 : vector<1x512xf32> to vector<16x512xf32>
    %48 = arith.addf %45, %47 : vector<16x512xf32>
    %49 = vector.extract_strided_slice %48 {offsets = [0, 0], sizes = [8, 512], strides = [1, 1]} : vector<16x512xf32> to vector<8x512xf32>
    %50 = vector.extract_strided_slice %48 {offsets = [8, 0], sizes = [8, 512], strides = [1, 1]} : vector<16x512xf32> to vector<8x512xf32>
    %51 = arith.subf %49, %50 : vector<8x512xf32>
    %52 = math.absf %51 : vector<8x512xf32>
    %53 = arith.addf %17, %52 : vector<8x512xf32>
    %cst_26 = arith.constant 5.000000e-01 : f32
    %54 = vector.broadcast %cst_26 : f32 to vector<16x512xf32>
    %55 = arith.mulf %54, %48 : vector<16x512xf32>
    %cst_27 = arith.constant 4.471500e-02 : f32
    %56 = vector.broadcast %cst_27 : f32 to vector<16x512xf32>
    %57 = arith.mulf %56, %48 : vector<16x512xf32>
    %58 = arith.mulf %57, %48 : vector<16x512xf32>
    %59 = arith.mulf %58, %48 : vector<16x512xf32>
    %60 = arith.addf %48, %59 : vector<16x512xf32>
    %cst_28 = arith.constant 0.797884583 : f32
    %61 = vector.broadcast %cst_28 : f32 to vector<16x512xf32>
    %62 = arith.mulf %61, %60 : vector<16x512xf32>
    %63 = math.tanh %62 : vector<16x512xf32>
    %cst_29 = arith.constant 1.000000e+00 : f32
    %64 = vector.broadcast %cst_29 : f32 to vector<16x512xf32>
    %65 = arith.addf %64, %63 : vector<16x512xf32>
    %66 = arith.mulf %55, %65 : vector<16x512xf32>
    %67 = arith.truncf %66 : vector<16x512xf32> to vector<16x512xbf16>
    %c0_30 = arith.constant 0 : index
    %c0_31 = arith.constant 0 : index
    %68 = vector.load %arg9[%c0_30, %c0_31] : memref<512x128xbf16, #tpu.memory_space<vmem>>, vector<512x128xbf16>
    %cst_32 = arith.constant dense<0.000000e+00> : vector<16x128xf32>
    %69 = tpu.matmul %67, %68, %cst_32 {dimension_numbers = #tpu.dot_dimension_numbers<[1], [0], [0], [1], [0, 0, 1, 1], [], []>} : vector<16x512xbf16>, vector<512x128xbf16>, vector<16x128xf32> -> vector<16x128xf32>
    %c0_33 = arith.constant 0 : index
    %c0_34 = arith.constant 0 : index
    %70 = vector.load %arg10[%c0_33, %c0_34] : memref<1x128xf32, #tpu.memory_space<vmem>>, vector<1x128xf32>
    %71 = vector.broadcast %70 : vector<1x128xf32> to vector<16x128xf32>
    %72 = arith.addf %69, %71 : vector<16x128xf32>
    %73 = vector.extract_strided_slice %72 {offsets = [0, 0], sizes = [8, 128], strides = [1, 1]} : vector<16x128xf32> to vector<8x128xf32>
    %74 = vector.extract_strided_slice %72 {offsets = [8, 0], sizes = [8, 128], strides = [1, 1]} : vector<16x128xf32> to vector<8x128xf32>
    %75 = arith.subf %73, %74 : vector<8x128xf32>
    %76 = math.absf %75 : vector<8x128xf32>
    %77 = arith.addf %41, %76 : vector<8x128xf32>
    %78 = vector.shape_cast %53 : vector<8x512xf32> to vector<1x8x512xf32>
    %cst_35 = arith.constant dense<0.000000e+00> : vector<1xf32>
    %79 = vector.multi_reduction <add>, %78, %cst_35 [1, 2] : vector<1x8x512xf32> to vector<1xf32>
    %80 = vector.shape_cast %79 : vector<1xf32> to vector<1x1x1xf32>
    %81 = vector.extract %80[0, 0, 0] : f32 from vector<1x1x1xf32>
    %cst_36 = arith.constant 2.44140625E-4 : f32
    %82 = arith.mulf %81, %cst_36 : f32
    %83 = vector.shape_cast %77 : vector<8x128xf32> to vector<1x8x128xf32>
    %cst_37 = arith.constant dense<0.000000e+00> : vector<1xf32>
    %84 = vector.multi_reduction <add>, %83, %cst_37 [1, 2] : vector<1x8x128xf32> to vector<1xf32>
    %85 = vector.shape_cast %84 : vector<1xf32> to vector<1x1x1xf32>
    %86 = vector.extract %85[0, 0, 0] : f32 from vector<1x1x1xf32>
    %cst_38 = arith.constant 9.765625E-4 : f32
    %87 = arith.mulf %86, %cst_38 : f32
    %88 = arith.addf %82, %87 : f32
    %cst_39 = arith.constant 1.000000e+00 : f32
    %89 = arith.mulf %88, %cst_39 : f32
    %c0_40 = arith.constant 0 : index
    %c0_41 = arith.constant 0 : index
    %90 = memref.load %arg11[%c0_40, %c0_41] : memref<1x1xf32, #tpu.memory_space<smem>>
    memref.store %89, %arg11[%c0_40, %c0_41] : memref<1x1xf32, #tpu.memory_space<smem>>
    return
  }
}

</mosaic_0001>

<llo_original>
// kernel: tpu_custom_call.1
$region0: #{tpu_custom_call.1}
  #allocation0 [shape = 'u32[]', space=smem, size = 0x4, offset = 0x4, fixed_abs, tag = 'smem constant byte address 0x4 - core index']
  #allocation1 [shape = 'u32[72,128]{1,0:T(1,128)}', space=vmem, size = 0x9000, scoped, tag = 'internal scratch']
  %s0 = inlined_call_operand.hbm [shape: bf16[16,640], index: 0, kind: input, shape index: {}]
  %s1 = inlined_call_operand.hbm [shape: bf16[640,128], index: 1, kind: input, shape index: {}]
  %s2 = inlined_call_operand.hbm [shape: f32[16,128], index: 2, kind: input, shape index: {}]
  %s3 = inlined_call_operand.hbm [shape: bf16[128,512], index: 3, kind: input, shape index: {}]
  %s4 = inlined_call_operand.hbm [shape: f32[1,512], index: 4, kind: input, shape index: {}]
  %s5 = inlined_call_operand.hbm [shape: bf16[512,128], index: 5, kind: input, shape index: {}]
  %s6 = inlined_call_operand.vmem [shape: f32[1,128], index: 6, kind: input, shape index: {}]
  %s7 = inlined_call_operand.hbm [shape: bf16[128,512], index: 7, kind: input, shape index: {}]
  %s8 = inlined_call_operand.vmem [shape: f32[1,512], index: 8, kind: input, shape index: {}]
  %s9 = inlined_call_operand.hbm [shape: bf16[512,128], index: 9, kind: input, shape index: {}]
  %s10 = inlined_call_operand.vmem [shape: f32[1,128], index: 10, kind: input, shape index: {}]
  %s11 = inlined_call_operand.hbm [shape: f32[1,1], index: 11, kind: output, shape index: {}]
  %s12 = sld [smem:[#allocation0]]
  $region86: #{tpu_custom_call.1} parent=0
    _
  %s14 = ssub.s32 1, %s12
  %s15 = scalar_select 0, %s14, %s12
  $region1: #{tpu_custom_call.1} parent=0
    #allocation2 [shape = 'u8[20480]{0}', space=vmem, size = 0x5000, scoped, tag = 'input window, operand 0, single buffered']
    #allocation3 [shape = 's32[1]{0}', space=sflag, size = 0x4, scoped, tag = 'scoped memory for tpu_custom_call.1']
    #allocation4 [shape = 's32[1]{0}', space=sflag, size = 0x4, scoped, tag = 'scoped memory for tpu_custom_call.1']
    #allocation5 [shape = 'u8[163840]{0}', space=vmem, size = 0x28000, scoped, tag = 'input window, operand 1, single buffered']
    #allocation6 [shape = 's32[1]{0}', space=sflag, size = 0x4, scoped, tag = 'scoped memory for tpu_custom_call.1']
    #allocation7 [shape = 'u8[8192]{0}', space=vmem, size = 0x2000, scoped, tag = 'input window, operand 2, single buffered']
    #allocation8 [shape = 'u8[131072]{0}', space=vmem, size = 0x20000, scoped, tag = 'input window, operand 3, single buffered']
    #allocation9 [shape = 's32[1]{0}', space=sflag, size = 0x4, scoped, tag = 'scoped memory for tpu_custom_call.1']
    #allocation10 [shape = 'u8[2048]{0}', space=vmem, size = 0x800, scoped, tag = 'input window, operand 4, single buffered']
    #allocation11 [shape = 'u8[131072]{0}', space=vmem, size = 0x20000, scoped, tag = 'input window, operand 5, single buffered']
    #allocation12 [shape = 's32[1]{0}', space=sflag, size = 0x4, scoped, tag = 'scoped memory for tpu_custom_call.1']
    #allocation13 [shape = 'u8[131072]{0}', space=vmem, size = 0x20000, scoped, tag = 'input window, operand 7, single buffered']
    #allocation14 [shape = 'u8[131072]{0}', space=vmem, size = 0x20000, scoped, tag = 'input window, operand 9, single buffered']
    #allocation15 [shape = 's32[1]{0}', space=sflag, size = 0x4, scoped, tag = 'scoped memory for tpu_custom_call.1']
    #allocation16 [shape = 'u8[512]{0}', space=smem, size = 0x200, scoped, tag = 'output window, operand 0, single buffered']
    %16 = vsyncpa [#allocation3], 0
    %17 = vsyncpa [#allocation6], 0
    %18 = vsyncpa [#allocation9], 0
    %19 = vsyncpa [#allocation12], 0
    %20 = vsyncpa [#allocation15], 0
    %21 = vsyncpa [#allocation4], 0
    // Predicated region
    $region2: #{tpu_custom_call.1} parent=1 // pred_check
      _
    $region3: #{tpu_custom_call.1} parent=1 // pred_check_branch
      %23 = sbr.rel (0) target = $region5
    $region4: #{tpu_custom_call.1} parent=1 // pred_region
      %25 = vsyncadd [#allocation3], 0
      %s26 = sshll.u32 %s0, 4
      %s27 = int_to_ptr.hbm [resolvable:$true] %s26
      %s28 = sshll.u32 [#allocation2], 4
      %s29 = int_to_ptr.vmem [resolvable:$true] %s28
      %34 = dma.hbm_to_vmem [thread:$0]  %s27, 640, %s29, [#allocation3], 320, 320, 20
    $region5: #{tpu_custom_call.1} parent=1 // pred_fallthru
      _
    // Predicated region
    $region6: #{tpu_custom_call.1} parent=1 // pred_check
      _
    $region7: #{tpu_custom_call.1} parent=1 // pred_check_branch
      %36 = sbr.rel (0) target = $region9
    $region8: #{tpu_custom_call.1} parent=1 // pred_region
      %38 = vsyncadd [#allocation6], 0
      %s39 = sshll.u32 %s1, 4
      %s40 = int_to_ptr.hbm [resolvable:$true] %s39
      %s41 = sshll.u32 [#allocation5], 4
      %s42 = int_to_ptr.vmem [resolvable:$true] %s41
      %47 = dma.hbm_to_vmem [thread:$0]  %s40, 5120, %s42, [#allocation6], 64, 64, 4
    $region9: #{tpu_custom_call.1} parent=1 // pred_fallthru
      _
    // Predicated region
    $region10: #{tpu_custom_call.1} parent=1 // pred_check
      _
    $region11: #{tpu_custom_call.1} parent=1 // pred_check_branch
      %49 = sbr.rel (0) target = $region13
    $region12: #{tpu_custom_call.1} parent=1 // pred_region
      %51 = vsyncadd [#allocation6], 0
      %s52 = sshll.u32 %s2, 4
      %s53 = int_to_ptr.hbm [resolvable:$true] %s52
      %s54 = sshll.u32 [#allocation7], 4
      %s55 = int_to_ptr.vmem [resolvable:$true] %s54
      %60 = dma.hbm_to_vmem [thread:$0]  %s53, 256, %s55, [#allocation6], 128, 128, 8
    $region13: #{tpu_custom_call.1} parent=1 // pred_fallthru
      _
    // Predicated region
    $region14: #{tpu_custom_call.1} parent=1 // pred_check
      _
    $region15: #{tpu_custom_call.1} parent=1 // pred_check_branch
      %62 = sbr.rel (0) target = $region17
    $region16: #{tpu_custom_call.1} parent=1 // pred_region
      %64 = vsyncadd [#allocation9], 0
      %s65 = sshll.u32 %s3, 4
      %s66 = int_to_ptr.hbm [resolvable:$true] %s65
      %s67 = sshll.u32 [#allocation8], 4
      %s68 = int_to_ptr.vmem [resolvable:$true] %s67
      %73 = dma.hbm_to_vmem [thread:$0]  %s66, 4096, %s68, [#allocation9], 256, 256, 16
    $region17: #{tpu_custom_call.1} parent=1 // pred_fallthru
      _
    // Predicated region
    $region18: #{tpu_custom_call.1} parent=1 // pred_check
      _
    $region19: #{tpu_custom_call.1} parent=1 // pred_check_branch
      %75 = sbr.rel (0) target = $region21
    $region20: #{tpu_custom_call.1} parent=1 // pred_region
      %77 = vsyncadd [#allocation9], 0
      %s79 = sshll.u32 %s4, 4
      %s80 = int_to_ptr.hbm [resolvable:$true] %s79
      %s81 = sshll.u32 [#allocation10], 4
      %s82 = int_to_ptr.vmem [resolvable:$true] %s81
      %84 = dma.hbm_to_vmem [thread:$0]  %s80, 64, %s82, [#allocation9]
    $region21: #{tpu_custom_call.1} parent=1 // pred_fallthru
      _
    // Predicated region
    $region22: #{tpu_custom_call.1} parent=1 // pred_check
      _
    $region23: #{tpu_custom_call.1} parent=1 // pred_check_branch
      %86 = sbr.rel (0) target = $region25
    $region24: #{tpu_custom_call.1} parent=1 // pred_region
      %88 = vsyncadd [#allocation12], 0
      %s89 = sshll.u32 %s5, 4
      %s90 = int_to_ptr.hbm [resolvable:$true] %s89
      %s91 = sshll.u32 [#allocation11], 4
      %s92 = int_to_ptr.vmem [resolvable:$true] %s91
      %97 = dma.hbm_to_vmem [thread:$0]  %s90, 4096, %s92, [#allocation12], 64, 64, 4
    $region25: #{tpu_custom_call.1} parent=1 // pred_fallthru
      _
    // Predicated region
    $region26: #{tpu_custom_call.1} parent=1 // pred_check
      _
    $region27: #{tpu_custom_call.1} parent=1 // pred_check_branch
      %99 = sbr.rel (0) target = $region29
    $region28: #{tpu_custom_call.1} parent=1 // pred_region
      _
    $region29: #{tpu_custom_call.1} parent=1 // pred_fallthru
      _
    // Predicated region
    $region30: #{tpu_custom_call.1} parent=1 // pred_check
      _
    $region31: #{tpu_custom_call.1} parent=1 // pred_check_branch
      %101 = sbr.rel (0) target = $region33
    $region32: #{tpu_custom_call.1} parent=1 // pred_region
      %103 = vsyncadd [#allocation12], 0
      %s104 = sshll.u32 %s7, 4
      %s105 = int_to_ptr.hbm [resolvable:$true] %s104
      %s106 = sshll.u32 [#allocation13], 4
      %s107 = int_to_ptr.vmem [resolvable:$true] %s106
      %112 = dma.hbm_to_vmem [thread:$0]  %s105, 4096, %s107, [#allocation12], 256, 256, 16
    $region33: #{tpu_custom_call.1} parent=1 // pred_fallthru
      _
    // Predicated region
    $region34: #{tpu_custom_call.1} parent=1 // pred_check
      _
    $region35: #{tpu_custom_call.1} parent=1 // pred_check_branch
      %114 = sbr.rel (0) target = $region37
    $region36: #{tpu_custom_call.1} parent=1 // pred_region
      _
    $region37: #{tpu_custom_call.1} parent=1 // pred_fallthru
      _
    // Predicated region
    $region38: #{tpu_custom_call.1} parent=1 // pred_check
      _
    $region39: #{tpu_custom_call.1} parent=1 // pred_check_branch
      %116 = sbr.rel (0) target = $region41
    $region40: #{tpu_custom_call.1} parent=1 // pred_region
      %118 = vsyncadd [#allocation15], 0
      %s119 = sshll.u32 %s9, 4
      %s120 = int_to_ptr.hbm [resolvable:$true] %s119
      %s121 = sshll.u32 [#allocation14], 4
      %s122 = int_to_ptr.vmem [resolvable:$true] %s121
      %127 = dma.hbm_to_vmem [thread:$0]  %s120, 4096, %s122, [#allocation15], 64, 64, 4
    $region41: #{tpu_custom_call.1} parent=1 // pred_fallthru
      _
    // Predicated region
    $region42: #{tpu_custom_call.1} parent=1 // pred_check
      _
    $region43: #{tpu_custom_call.1} parent=1 // pred_check_branch
      %129 = sbr.rel (0) target = $region45
    $region44: #{tpu_custom_call.1} parent=1 // pred_region
      _
    $region45: #{tpu_custom_call.1} parent=1 // pred_fallthru
      _
    // Predicated region
    $region46: #{tpu_custom_call.1} parent=1 // pred_check
      _
    $region47: #{tpu_custom_call.1} parent=1 // pred_check_branch
      %131 = sbr.rel (0) target = $region49
    $region48: #{tpu_custom_call.1} parent=1 // pred_region
      %133 = dma.done [#allocation3], 640
    $region49: #{tpu_custom_call.1} parent=1 // pred_fallthru
      _
    // Predicated region
    $region50: #{tpu_custom_call.1} parent=1 // pred_check
      _
    $region51: #{tpu_custom_call.1} parent=1 // pred_check_branch
      %135 = sbr.rel (0) target = $region53
    $region52: #{tpu_custom_call.1} parent=1 // pred_region
      %137 = dma.done [#allocation6], 5120
    $region53: #{tpu_custom_call.1} parent=1 // pred_fallthru
      _
    // Predicated region
    $region54: #{tpu_custom_call.1} parent=1 // pred_check
      _
    $region55: #{tpu_custom_call.1} parent=1 // pred_check_branch
      %139 = sbr.rel (0) target = $region57
    $region56: #{tpu_custom_call.1} parent=1 // pred_region
      %141 = dma.done [#allocation6], 256
    $region57: #{tpu_custom_call.1} parent=1 // pred_fallthru
      _
    // Predicated region
    $region58: #{tpu_custom_call.1} parent=1 // pred_check
      _
    $region59: #{tpu_custom_call.1} parent=1 // pred_check_branch
      %143 = sbr.rel (0) target = $region61
    $region60: #{tpu_custom_call.1} parent=1 // pred_region
      %145 = dma.done [#allocation9], 4096
    $region61: #{tpu_custom_call.1} parent=1 // pred_fallthru
      _
    // Predicated region
    $region62: #{tpu_custom_call.1} parent=1 // pred_check
      _
    $region63: #{tpu_custom_call.1} parent=1 // pred_check_branch
      %147 = sbr.rel (0) target = $region65
    $region64: #{tpu_custom_call.1} parent=1 // pred_region
      %149 = dma.done [#allocation9], 64
    $region65: #{tpu_custom_call.1} parent=1 // pred_fallthru
      _
    // Predicated region
    $region66: #{tpu_custom_call.1} parent=1 // pred_check
      _
    $region67: #{tpu_custom_call.1} parent=1 // pred_check_branch
      %151 = sbr.rel (0) target = $region69
    $region68: #{tpu_custom_call.1} parent=1 // pred_region
      %153 = dma.done [#allocation12], 4096
    $region69: #{tpu_custom_call.1} parent=1 // pred_fallthru
      _
    // Predicated region
    $region70: #{tpu_custom_call.1} parent=1 // pred_check
      _
    $region71: #{tpu_custom_call.1} parent=1 // pred_check_branch
      %155 = sbr.rel (0) target = $region73
    $region72: #{tpu_custom_call.1} parent=1 // pred_region
      %157 = dma.done [#allocation12], 4096
    $region73: #{tpu_custom_call.1} parent=1 // pred_fallthru
      _
    // Predicated region
    $region74: #{tpu_custom_call.1} parent=1 // pred_check
      _
    $region75: #{tpu_custom_call.1} parent=1 // pred_check_branch
      %159 = sbr.rel (0) target = $region77
    $region76: #{tpu_custom_call.1} parent=1 // pred_region
      %161 = dma.done [#allocation15], 4096
    $region77: #{tpu_custom_call.1} parent=1 // pred_fallthru
      _
    %v162 = vld [vmem:[#allocation2] sm:$0xff]
    %v163 = vld [vmem:[#allocation2 + $0x8] sm:$0xff]
    %v164 = vld [vmem:[#allocation2 + $0x10] sm:$0xf]
    %v165 = vld [vmem:[#allocation2 + $0x14] sm:$0xff]
    %v166 = vld [vmem:[#allocation2 + $0x1c] sm:$0xff]
    %v167 = vld [vmem:[#allocation2 + $0x24] sm:$0xf]
    %v168 = vld [vmem:[#allocation5] sm:$0xf]
    %v169 = vld [vmem:[#allocation5 + $0x4] sm:$0xf]
    %v170 = vld [vmem:[#allocation5 + $0x8] sm:$0xf]
    %v171 = vld [vmem:[#allocation5 + $0xc] sm:$0xf]
    %v172 = vld [vmem:[#allocation5 + $0x10] sm:$0xf]
    %v173 = vld [vmem:[#allocation5 + $0x14] sm:$0xf]
    %v174 = vld [vmem:[#allocation5 + $0x18] sm:$0xf]
    %v175 = vld [vmem:[#allocation5 + $0x1c] sm:$0xf]
    %v176 = vld [vmem:[#allocation5 + $0x20] sm:$0xf]
    %v177 = vld [vmem:[#allocation5 + $0x24] sm:$0xf]
    %v178 = vld [vmem:[#allocation5 + $0x28] sm:$0xf]
    %v179 = vld [vmem:[#allocation5 + $0x2c] sm:$0xf]
    %v180 = vld [vmem:[#allocation5 + $0x30] sm:$0xf]
    %v181 = vld [vmem:[#allocation5 + $0x34] sm:$0xf]
    %v182 = vld [vmem:[#allocation5 + $0x38] sm:$0xf]
    %v183 = vld [vmem:[#allocation5 + $0x3c] sm:$0xf]
    %v184 = vld [vmem:[#allocation5 + $0x40] sm:$0xf]
    %v185 = vld [vmem:[#allocation5 + $0x44] sm:$0xf]
    %v186 = vld [vmem:[#allocation5 + $0x48] sm:$0xf]
    %v187 = vld [vmem:[#allocation5 + $0x4c] sm:$0xf]
    %v188 = vld [vmem:[#allocation5 + $0x50] sm:$0xf]
    %v189 = vld [vmem:[#allocation5 + $0x54] sm:$0xf]
    %v190 = vld [vmem:[#allocation5 + $0x58] sm:$0xf]
    %v191 = vld [vmem:[#allocation5 + $0x5c] sm:$0xf]
    %v192 = vld [vmem:[#allocation5 + $0x60] sm:$0xf]
    %v193 = vld [vmem:[#allocation5 + $0x64] sm:$0xf]
    %v194 = vld [vmem:[#allocation5 + $0x68] sm:$0xf]
    %v195 = vld [vmem:[#allocation5 + $0x6c] sm:$0xf]
    %v196 = vld [vmem:[#allocation5 + $0x70] sm:$0xf]
    %v197 = vld [vmem:[#allocation5 + $0x74] sm:$0xf]
    %v198 = vld [vmem:[#allocation5 + $0x78] sm:$0xf]
    %v199 = vld [vmem:[#allocation5 + $0x7c] sm:$0xf]
    %v200 = vld [vmem:[#allocation5 + $0x80] sm:$0xf]
    %v201 = vld [vmem:[#allocation5 + $0x84] sm:$0xf]
    %v202 = vld [vmem:[#allocation5 + $0x88] sm:$0xf]
    %v203 = vld [vmem:[#allocation5 + $0x8c] sm:$0xf]
    %v204 = vld [vmem:[#allocation5 + $0x90] sm:$0xf]
    %v205 = vld [vmem:[#allocation5 + $0x94] sm:$0xf]
    %v206 = vld [vmem:[#allocation5 + $0x98] sm:$0xf]
    %v207 = vld [vmem:[#allocation5 + $0x9c] sm:$0xf]
    %v208 = vld [vmem:[#allocation5 + $0xa0] sm:$0xf]
    %v209 = vld [vmem:[#allocation5 + $0xa4] sm:$0xf]
    %v210 = vld [vmem:[#allocation5 + $0xa8] sm:$0xf]
    %v211 = vld [vmem:[#allocation5 + $0xac] sm:$0xf]
    %v212 = vld [vmem:[#allocation5 + $0xb0] sm:$0xf]
    %v213 = vld [vmem:[#allocation5 + $0xb4] sm:$0xf]
    %v214 = vld [vmem:[#allocation5 + $0xb8] sm:$0xf]
    %v215 = vld [vmem:[#allocation5 + $0xbc] sm:$0xf]
    %v216 = vld [vmem:[#allocation5 + $0xc0] sm:$0xf]
    %v217 = vld [vmem:[#allocation5 + $0xc4] sm:$0xf]
    %v218 = vld [vmem:[#allocation5 + $0xc8] sm:$0xf]
    %v219 = vld [vmem:[#allocation5 + $0xcc] sm:$0xf]
    %v220 = vld [vmem:[#allocation5 + $0xd0] sm:$0xf]
    %v221 = vld [vmem:[#allocation5 + $0xd4] sm:$0xf]
    %v222 = vld [vmem:[#allocation5 + $0xd8] sm:$0xf]
    %v223 = vld [vmem:[#allocation5 + $0xdc] sm:$0xf]
    %v224 = vld [vmem:[#allocation5 + $0xe0] sm:$0xf]
    %v225 = vld [vmem:[#allocation5 + $0xe4] sm:$0xf]
    %v226 = vld [vmem:[#allocation5 + $0xe8] sm:$0xf]
    %v227 = vld [vmem:[#allocation5 + $0xec] sm:$0xf]
    %v228 = vld [vmem:[#allocation5 + $0xf0] sm:$0xf]
    %v229 = vld [vmem:[#allocation5 + $0xf4] sm:$0xf]
    %v230 = vld [vmem:[#allocation5 + $0xf8] sm:$0xf]
    %v231 = vld [vmem:[#allocation5 + $0xfc] sm:$0xf]
    %v232 = vld [vmem:[#allocation5 + $0x100] sm:$0xf]
    %v233 = vld [vmem:[#allocation5 + $0x104] sm:$0xf]
    %v234 = vld [vmem:[#allocation5 + $0x108] sm:$0xf]
    %v235 = vld [vmem:[#allocation5 + $0x10c] sm:$0xf]
    %v236 = vld [vmem:[#allocation5 + $0x110] sm:$0xf]
    %v237 = vld [vmem:[#allocation5 + $0x114] sm:$0xf]
    %v238 = vld [vmem:[#allocation5 + $0x118] sm:$0xf]
    %v239 = vld [vmem:[#allocation5 + $0x11c] sm:$0xf]
    %v240 = vld [vmem:[#allocation5 + $0x120] sm:$0xf]
    %v241 = vld [vmem:[#allocation5 + $0x124] sm:$0xf]
    %v242 = vld [vmem:[#allocation5 + $0x128] sm:$0xf]
    %v243 = vld [vmem:[#allocation5 + $0x12c] sm:$0xf]
    %v244 = vld [vmem:[#allocation5 + $0x130] sm:$0xf]
    %v245 = vld [vmem:[#allocation5 + $0x134] sm:$0xf]
    %v246 = vld [vmem:[#allocation5 + $0x138] sm:$0xf]
    %v247 = vld [vmem:[#allocation5 + $0x13c] sm:$0xf]
    %v248 = vld [vmem:[#allocation7] sm:$0xff]
    %v249 = vld [vmem:[#allocation7 + $0x8] sm:$0xff]
    %v256 = vunpack.c.l.b16 %v162
    %v257 = vunpack.c.h.b16 %v162
    %v258 = vunpack.c.l.b16 %v163
    %v259 = vunpack.c.h.b16 %v163
    %v260 = vunpack.c.l.b16 %v164
    %v261 = vunpack.c.l.b16 %v165
    %v262 = vunpack.c.h.b16 %v165
    %v263 = vunpack.c.l.b16 %v166
    %v264 = vunpack.c.h.b16 %v166
    %v265 = vunpack.c.l.b16 %v167
    %v266 = vpack.c.b16 %v261, %v256
    %v267 = vpack.c.b16 %v262, %v257
    %v268 = vpack.c.b16 %v263, %v258
    %v269 = vpack.c.b16 %v264, %v259
    %v270 = vpack.c.b16 %v265, %v260
    %v356 = vunpack.c.l.b16 %v168
    %v357 = vunpack.c.l.b16 %v169
    %v358 = vunpack.c.l.b16 %v170
    %v359 = vunpack.c.l.b16 %v171
    %v360 = vunpack.c.l.b16 %v172
    %v361 = vunpack.c.l.b16 %v173
    %v362 = vunpack.c.l.b16 %v174
    %v363 = vunpack.c.l.b16 %v175
    %v364 = vunpack.c.l.b16 %v176
    %v365 = vunpack.c.l.b16 %v177
    %v366 = vunpack.c.l.b16 %v178
    %v367 = vunpack.c.l.b16 %v179
    %v368 = vunpack.c.l.b16 %v180
    %v369 = vunpack.c.l.b16 %v181
    %v370 = vunpack.c.l.b16 %v182
    %v371 = vunpack.c.l.b16 %v183
    %v372 = vunpack.c.l.b16 %v184
    %v373 = vunpack.c.l.b16 %v185
    %v374 = vunpack.c.l.b16 %v186
    %v375 = vunpack.c.l.b16 %v187
    %v376 = vunpack.c.l.b16 %v188
    %v377 = vunpack.c.l.b16 %v189
    %v378 = vunpack.c.l.b16 %v190
    %v379 = vunpack.c.l.b16 %v191
    %v380 = vunpack.c.l.b16 %v192
    %v381 = vunpack.c.l.b16 %v193
    %v382 = vunpack.c.l.b16 %v194
    %v383 = vunpack.c.l.b16 %v195
    %v384 = vunpack.c.l.b16 %v196
    %v385 = vunpack.c.l.b16 %v197
    %v386 = vunpack.c.l.b16 %v198
    %v387 = vunpack.c.l.b16 %v199
    %v388 = vunpack.c.l.b16 %v200
    %v389 = vunpack.c.l.b16 %v201
    %v390 = vunpack.c.l.b16 %v202
    %v391 = vunpack.c.l.b16 %v203
    %v392 = vunpack.c.l.b16 %v204
    %v393 = vunpack.c.l.b16 %v205
    %v394 = vunpack.c.l.b16 %v206
    %v395 = vunpack.c.l.b16 %v207
    %v396 = vunpack.c.l.b16 %v208
    %v397 = vunpack.c.l.b16 %v209
    %v398 = vunpack.c.l.b16 %v210
    %v399 = vunpack.c.l.b16 %v211
    %v400 = vunpack.c.l.b16 %v212
    %v401 = vunpack.c.l.b16 %v213
    %v402 = vunpack.c.l.b16 %v214
    %v403 = vunpack.c.l.b16 %v215
    %v404 = vunpack.c.l.b16 %v216
    %v405 = vunpack.c.l.b16 %v217
    %v406 = vunpack.c.l.b16 %v218
    %v407 = vunpack.c.l.b16 %v219
    %v408 = vunpack.c.l.b16 %v220
    %v409 = vunpack.c.l.b16 %v221
    %v410 = vunpack.c.l.b16 %v222
    %v411 = vunpack.c.l.b16 %v223
    %v412 = vunpack.c.l.b16 %v224
    %v413 = vunpack.c.l.b16 %v225
    %v414 = vunpack.c.l.b16 %v226
    %v415 = vunpack.c.l.b16 %v227
    %v416 = vunpack.c.l.b16 %v228
    %v417 = vunpack.c.l.b16 %v229
    %v418 = vunpack.c.l.b16 %v230
    %v419 = vunpack.c.l.b16 %v231
    %v420 = vunpack.c.l.b16 %v232
    %v421 = vunpack.c.l.b16 %v233
    %v422 = vunpack.c.l.b16 %v234
    %v423 = vunpack.c.l.b16 %v235
    %v424 = vunpack.c.l.b16 %v236
    %v425 = vunpack.c.l.b16 %v237
    %v426 = vunpack.c.l.b16 %v238
    %v427 = vunpack.c.l.b16 %v239
    %v428 = vunpack.c.l.b16 %v240
    %v429 = vunpack.c.l.b16 %v241
    %v430 = vunpack.c.l.b16 %v242
    %v431 = vunpack.c.l.b16 %v243
    %v432 = vunpack.c.l.b16 %v244
    %v433 = vunpack.c.l.b16 %v245
    %v434 = vunpack.c.l.b16 %v246
    %v435 = vunpack.c.l.b16 %v247
    %v436 = vpack.c.b16 %v357, %v356
    %v437 = vpack.c.b16 %v359, %v358
    %v438 = vpack.c.b16 %v361, %v360
    %v439 = vpack.c.b16 %v363, %v362
    %v440 = vpack.c.b16 %v365, %v364
    %v441 = vpack.c.b16 %v367, %v366
    %v442 = vpack.c.b16 %v369, %v368
    %v443 = vpack.c.b16 %v371, %v370
    %v444 = vpack.c.b16 %v373, %v372
    %v445 = vpack.c.b16 %v375, %v374
    %v446 = vpack.c.b16 %v377, %v376
    %v447 = vpack.c.b16 %v379, %v378
    %v448 = vpack.c.b16 %v381, %v380
    %v449 = vpack.c.b16 %v383, %v382
    %v450 = vpack.c.b16 %v385, %v384
    %v451 = vpack.c.b16 %v387, %v386
    %v452 = vpack.c.b16 %v389, %v388
    %v453 = vpack.c.b16 %v391, %v390
    %v454 = vpack.c.b16 %v393, %v392
    %v455 = vpack.c.b16 %v395, %v394
    %v456 = vpack.c.b16 %v397, %v396
    %v457 = vpack.c.b16 %v399, %v398
    %v458 = vpack.c.b16 %v401, %v400
    %v459 = vpack.c.b16 %v403, %v402
    %v460 = vpack.c.b16 %v405, %v404
    %v461 = vpack.c.b16 %v407, %v406
    %v462 = vpack.c.b16 %v409, %v408
    %v463 = vpack.c.b16 %v411, %v410
    %v464 = vpack.c.b16 %v413, %v412
    %v465 = vpack.c.b16 %v415, %v414
    %v466 = vpack.c.b16 %v417, %v416
    %v467 = vpack.c.b16 %v419, %v418
    %v468 = vpack.c.b16 %v421, %v420
    %v469 = vpack.c.b16 %v423, %v422
    %v470 = vpack.c.b16 %v425, %v424
    %v471 = vpack.c.b16 %v427, %v426
    %v472 = vpack.c.b16 %v429, %v428
    %v473 = vpack.c.b16 %v431, %v430
    %v474 = vpack.c.b16 %v433, %v432
    %v475 = vpack.c.b16 %v435, %v434
    %516 = vmatpush.bf16.msra.mxu0 %v443
    %517 = vmatpush.bf16.msra.mxu0 %v442
    %518 = vmatpush.bf16.msra.mxu0 %v441
    %519 = vmatpush.bf16.msra.mxu0 %v440
    %520 = vmatpush.bf16.msra.mxu0 %v439
    %521 = vmatpush.bf16.msra.mxu0 %v438
    %522 = vmatpush.bf16.msra.mxu0 %v437
    %523 = vmatpush.bf16.msra.mxu0 %v436
    %524 = vmatmul.bf16.gmra.mxu0 %v266
    %v525 = vpop.f32.mrf.mxu0
    %v526 = vadd.f32 %v248, %v525
    %v527 = vpop.f32.mrf.mxu0
    %v528 = vadd.f32 %v249, %v527
    %529 = vdwg.mxu0
    %530 = vmatpush.bf16.msra.mxu0 %v451
    %531 = vmatpush.bf16.msra.mxu0 %v450
    %532 = vmatpush.bf16.msra.mxu0 %v449
    %533 = vmatpush.bf16.msra.mxu0 %v448
    %534 = vmatpush.bf16.msra.mxu0 %v447
    %535 = vmatpush.bf16.msra.mxu0 %v446
    %536 = vmatpush.bf16.msra.mxu0 %v445
    %537 = vmatpush.bf16.msra.mxu0 %v444
    %538 = vmatmul.bf16.gmra.mxu0 %v267
    %v539 = vpop.f32.mrf.mxu0
    %v540 = vadd.f32 %v526, %v539
    %v541 = vpop.f32.mrf.mxu0
    %v542 = vadd.f32 %v528, %v541
    %543 = vdwg.mxu0
    %544 = vmatpush.bf16.msra.mxu0 %v459
    %545 = vmatpush.bf16.msra.mxu0 %v458
    %546 = vmatpush.bf16.msra.mxu0 %v457
    %547 = vmatpush.bf16.msra.mxu0 %v456
    %548 = vmatpush.bf16.msra.mxu0 %v455
    %549 = vmatpush.bf16.msra.mxu0 %v454
    %550 = vmatpush.bf16.msra.mxu0 %v453
    %551 = vmatpush.bf16.msra.mxu0 %v452
    %552 = vmatmul.bf16.gmra.mxu0 %v268
    %v553 = vpop.f32.mrf.mxu0
    %v554 = vadd.f32 %v540, %v553
    %v555 = vpop.f32.mrf.mxu0
    %v556 = vadd.f32 %v542, %v555
    %557 = vdwg.mxu0
    %558 = vmatpush.bf16.msra.mxu0 %v467
    %559 = vmatpush.bf16.msra.mxu0 %v466
    %560 = vmatpush.bf16.msra.mxu0 %v465
    %561 = vmatpush.bf16.msra.mxu0 %v464
    %562 = vmatpush.bf16.msra.mxu0 %v463
    %563 = vmatpush.bf16.msra.mxu0 %v462
    %564 = vmatpush.bf16.msra.mxu0 %v461
    %565 = vmatpush.bf16.msra.mxu0 %v460
    %566 = vmatmul.bf16.gmra.mxu0 %v269
    %v567 = vpop.f32.mrf.mxu0
    %v568 = vadd.f32 %v554, %v567
    %v569 = vpop.f32.mrf.mxu0
    %v570 = vadd.f32 %v556, %v569
    %571 = vdwg.mxu0
    %572 = vmatpush.bf16.msra.mxu0 %v475
    %573 = vmatpush.bf16.msra.mxu0 %v474
    %574 = vmatpush.bf16.msra.mxu0 %v473
    %575 = vmatpush.bf16.msra.mxu0 %v472
    %576 = vmatpush.bf16.msra.mxu0 %v471
    %577 = vmatpush.bf16.msra.mxu0 %v470
    %578 = vmatpush.bf16.msra.mxu0 %v469
    %579 = vmatpush.bf16.msra.mxu0 %v468
    %580 = vmatmul.bf16.gmra.mxu0 %v270
    %v581 = vpop.f32.mrf.mxu0
    %v582 = vadd.f32 %v568, %v581
    %v583 = vpop.f32.mrf.mxu0
    %v584 = vadd.f32 %v570, %v583
    %585 = vdwg.mxu0
    %v586 = vpack.c.bf16 %v584, %v582
    %v587 = vld [vmem:[#allocation8] sm:$0xff]
    %v588 = vld [vmem:[#allocation8 + $0x8] sm:$0xff]
    %v589 = vld [vmem:[#allocation8 + $0x10] sm:$0xff]
    %v590 = vld [vmem:[#allocation8 + $0x18] sm:$0xff]
    %v591 = vld [vmem:[#allocation8 + $0x20] sm:$0xff]
    %v592 = vld [vmem:[#allocation8 + $0x28] sm:$0xff]
    %v593 = vld [vmem:[#allocation8 + $0x30] sm:$0xff]
    %v594 = vld [vmem:[#allocation8 + $0x38] sm:$0xff]
    %v595 = vld [vmem:[#allocation8 + $0x40] sm:$0xff]
    %v596 = vld [vmem:[#allocation8 + $0x48] sm:$0xff]
    %v597 = vld [vmem:[#allocation8 + $0x50] sm:$0xff]
    %v598 = vld [vmem:[#allocation8 + $0x58] sm:$0xff]
    %v599 = vld [vmem:[#allocation8 + $0x60] sm:$0xff]
    %v600 = vld [vmem:[#allocation8 + $0x68] sm:$0xff]
    %v601 = vld [vmem:[#allocation8 + $0x70] sm:$0xff]
    %v602 = vld [vmem:[#allocation8 + $0x78] sm:$0xff]
    %v603 = vld [vmem:[#allocation8 + $0x80] sm:$0xff]
    %v604 = vld [vmem:[#allocation8 + $0x88] sm:$0xff]
    %v605 = vld [vmem:[#allocation8 + $0x90] sm:$0xff]
    %v606 = vld [vmem:[#allocation8 + $0x98] sm:$0xff]
    %v607 = vld [vmem:[#allocation8 + $0xa0] sm:$0xff]
    %v608 = vld [vmem:[#allocation8 + $0xa8] sm:$0xff]
    %v609 = vld [vmem:[#allocation8 + $0xb0] sm:$0xff]
    %v610 = vld [vmem:[#allocation8 + $0xb8] sm:$0xff]
    %v611 = vld [vmem:[#allocation8 + $0xc0] sm:$0xff]
    %v612 = vld [vmem:[#allocation8 + $0xc8] sm:$0xff]
    %v613 = vld [vmem:[#allocation8 + $0xd0] sm:$0xff]
    %v614 = vld [vmem:[#allocation8 + $0xd8] sm:$0xff]
    %v615 = vld [vmem:[#allocation8 + $0xe0] sm:$0xff]
    %v616 = vld [vmem:[#allocation8 + $0xe8] sm:$0xff]
    %v617 = vld [vmem:[#allocation8 + $0xf0] sm:$0xff]
    %v618 = vld [vmem:[#allocation8 + $0xf8] sm:$0xff]
    %v619 = vld [vmem:[#allocation10] sm:$0xf]
    %v621 = vperm.slane %v619, 0
    %v622 = vperm.slane %v619, 1
    %v623 = vperm.slane %v619, 2
    %v624 = vperm.slane %v619, 3
    %v661 = vunpack.c.l.b16 %v587
    %v662 = vunpack.c.h.b16 %v587
    %v663 = vunpack.c.l.b16 %v588
    %v664 = vunpack.c.h.b16 %v588
    %v665 = vunpack.c.l.b16 %v589
    %v666 = vunpack.c.h.b16 %v589
    %v667 = vunpack.c.l.b16 %v590
    %v668 = vunpack.c.h.b16 %v590
    %v669 = vunpack.c.l.b16 %v591
    %v670 = vunpack.c.h.b16 %v591
    %v671 = vunpack.c.l.b16 %v592
    %v672 = vunpack.c.h.b16 %v592
    %v673 = vunpack.c.l.b16 %v593
    %v674 = vunpack.c.h.b16 %v593
    %v675 = vunpack.c.l.b16 %v594
    %v676 = vunpack.c.h.b16 %v594
    %v677 = vunpack.c.l.b16 %v595
    %v678 = vunpack.c.h.b16 %v595
    %v679 = vunpack.c.l.b16 %v596
    %v680 = vunpack.c.h.b16 %v596
    %v681 = vunpack.c.l.b16 %v597
    %v682 = vunpack.c.h.b16 %v597
    %v683 = vunpack.c.l.b16 %v598
    %v684 = vunpack.c.h.b16 %v598
    %v685 = vunpack.c.l.b16 %v599
    %v686 = vunpack.c.h.b16 %v599
    %v687 = vunpack.c.l.b16 %v600
    %v688 = vunpack.c.h.b16 %v600
    %v689 = vunpack.c.l.b16 %v601
    %v690 = vunpack.c.h.b16 %v601
    %v691 = vunpack.c.l.b16 %v602
    %v692 = vunpack.c.h.b16 %v602
    %v693 = vunpack.c.l.b16 %v603
    %v694 = vunpack.c.h.b16 %v603
    %v695 = vunpack.c.l.b16 %v604
    %v696 = vunpack.c.h.b16 %v604
    %v697 = vunpack.c.l.b16 %v605
    %v698 = vunpack.c.h.b16 %v605
    %v699 = vunpack.c.l.b16 %v606
    %v700 = vunpack.c.h.b16 %v606
    %v701 = vunpack.c.l.b16 %v607
    %v702 = vunpack.c.h.b16 %v607
    %v703 = vunpack.c.l.b16 %v608
    %v704 = vunpack.c.h.b16 %v608
    %v705 = vunpack.c.l.b16 %v609
    %v706 = vunpack.c.h.b16 %v609
    %v707 = vunpack.c.l.b16 %v610
    %v708 = vunpack.c.h.b16 %v610
    %v709 = vunpack.c.l.b16 %v611
    %v710 = vunpack.c.h.b16 %v611
    %v711 = vunpack.c.l.b16 %v612
    %v712 = vunpack.c.h.b16 %v612
    %v713 = vunpack.c.l.b16 %v613
    %v714 = vunpack.c.h.b16 %v613
    %v715 = vunpack.c.l.b16 %v614
    %v716 = vunpack.c.h.b16 %v614
    %v717 = vunpack.c.l.b16 %v615
    %v718 = vunpack.c.h.b16 %v615
    %v719 = vunpack.c.l.b16 %v616
    %v720 = vunpack.c.h.b16 %v616
    %v721 = vunpack.c.l.b16 %v617
    %v722 = vunpack.c.h.b16 %v617
    %v723 = vunpack.c.l.b16 %v618
    %v724 = vunpack.c.h.b16 %v618
    %v725 = vpack.c.b16 %v665, %v661
    %v726 = vpack.c.b16 %v666, %v662
    %v727 = vpack.c.b16 %v667, %v663
    %v728 = vpack.c.b16 %v668, %v664
    %v729 = vpack.c.b16 %v673, %v669
    %v730 = vpack.c.b16 %v674, %v670
    %v731 = vpack.c.b16 %v675, %v671
    %v732 = vpack.c.b16 %v676, %v672
    %v733 = vpack.c.b16 %v681, %v677
    %v734 = vpack.c.b16 %v682, %v678
    %v735 = vpack.c.b16 %v683, %v679
    %v736 = vpack.c.b16 %v684, %v680
    %v737 = vpack.c.b16 %v689, %v685
    %v738 = vpack.c.b16 %v690, %v686
    %v739 = vpack.c.b16 %v691, %v687
    %v740 = vpack.c.b16 %v692, %v688
    %v741 = vpack.c.b16 %v697, %v693
    %v742 = vpack.c.b16 %v698, %v694
    %v743 = vpack.c.b16 %v699, %v695
    %v744 = vpack.c.b16 %v700, %v696
    %v745 = vpack.c.b16 %v705, %v701
    %v746 = vpack.c.b16 %v706, %v702
    %v747 = vpack.c.b16 %v707, %v703
    %v748 = vpack.c.b16 %v708, %v704
    %v749 = vpack.c.b16 %v713, %v709
    %v750 = vpack.c.b16 %v714, %v710
    %v751 = vpack.c.b16 %v715, %v711
    %v752 = vpack.c.b16 %v716, %v712
    %v753 = vpack.c.b16 %v721, %v717
    %v754 = vpack.c.b16 %v722, %v718
    %v755 = vpack.c.b16 %v723, %v719
    %v756 = vpack.c.b16 %v724, %v720
    %789 = vmatpush.bf16.msra.mxu0 %v753
    %790 = vmatpush.bf16.msra.mxu0 %v749
    %791 = vmatpush.bf16.msra.mxu0 %v745
    %792 = vmatpush.bf16.msra.mxu0 %v741
    %793 = vmatpush.bf16.msra.mxu0 %v737
    %794 = vmatpush.bf16.msra.mxu0 %v733
    %795 = vmatpush.bf16.msra.mxu0 %v729
    %796 = vmatpush.bf16.msra.mxu0 %v725
    %797 = vmatmul.bf16.gmra.mxu0 %v586
    %v798 = vpop.f32.mrf.mxu0
    %v799 = vadd.f32 %v621, %v798
    %v800 = vpop.f32.mrf.mxu0
    %v801 = vadd.f32 %v621, %v800
    %802 = vdwg.mxu0
    %803 = vmatpush.bf16.msra.mxu0 %v754
    %804 = vmatpush.bf16.msra.mxu0 %v750
    %805 = vmatpush.bf16.msra.mxu0 %v746
    %806 = vmatpush.bf16.msra.mxu0 %v742
    %807 = vmatpush.bf16.msra.mxu0 %v738
    %808 = vmatpush.bf16.msra.mxu0 %v734
    %809 = vmatpush.bf16.msra.mxu0 %v730
    %810 = vmatpush.bf16.msra.mxu0 %v726
    %811 = vmatmul.bf16.gmra.mxu0 %v586
    %v812 = vpop.f32.mrf.mxu0
    %v813 = vadd.f32 %v622, %v812
    %v814 = vpop.f32.mrf.mxu0
    %v815 = vadd.f32 %v622, %v814
    %816 = vdwg.mxu0
    %817 = vmatpush.bf16.msra.mxu0 %v755
    %818 = vmatpush.bf16.msra.mxu0 %v751
    %819 = vmatpush.bf16.msra.mxu0 %v747
    %820 = vmatpush.bf16.msra.mxu0 %v743
    %821 = vmatpush.bf16.msra.mxu0 %v739
    %822 = vmatpush.bf16.msra.mxu0 %v735
    %823 = vmatpush.bf16.msra.mxu0 %v731
    %824 = vmatpush.bf16.msra.mxu0 %v727
    %825 = vmatmul.bf16.gmra.mxu0 %v586
    %v826 = vpop.f32.mrf.mxu0
    %v827 = vadd.f32 %v623, %v826
    %v828 = vpop.f32.mrf.mxu0
    %v829 = vadd.f32 %v623, %v828
    %830 = vdwg.mxu0
    %831 = vmatpush.bf16.msra.mxu0 %v756
    %832 = vmatpush.bf16.msra.mxu0 %v752
    %833 = vmatpush.bf16.msra.mxu0 %v748
    %834 = vmatpush.bf16.msra.mxu0 %v744
    %835 = vmatpush.bf16.msra.mxu0 %v740
    %836 = vmatpush.bf16.msra.mxu0 %v736
    %837 = vmatpush.bf16.msra.mxu0 %v732
    %838 = vmatpush.bf16.msra.mxu0 %v728
    %839 = vmatmul.bf16.gmra.mxu0 %v586
    %v840 = vpop.f32.mrf.mxu0
    %v841 = vadd.f32 %v624, %v840
    %v842 = vpop.f32.mrf.mxu0
    %v843 = vadd.f32 %v624, %v842
    %844 = vdwg.mxu0
    %v845 = vsub.f32 %v799, %v801
    %v846 = vsub.f32 %v813, %v815
    %v847 = vsub.f32 %v827, %v829
    %v848 = vsub.f32 %v841, %v843
    %v849 = vand.u32 2147483647, %v845
    %v850 = vand.u32 2147483647, %v846
    %v851 = vand.u32 2147483647, %v847
    %v852 = vand.u32 2147483647, %v848
    %v853 = vadd.f32 %v849, 0.0
    %v854 = vadd.f32 %v850, 0.0
    %v855 = vadd.f32 %v851, 0.0
    %v856 = vadd.f32 %v852, 0.0
    %v857 = vmul.f32 %v799, 0.5
    %v858 = vmul.f32 %v813, 0.5
    %v859 = vmul.f32 %v827, 0.5
    %v860 = vmul.f32 %v841, 0.5
    %v861 = vmul.f32 %v801, 0.5
    %v862 = vmul.f32 %v815, 0.5
    %v863 = vmul.f32 %v829, 0.5
    %v864 = vmul.f32 %v843, 0.5
    %v865 = vmul.f32 %v799, 0.044715
    %v866 = vmul.f32 %v813, 0.044715
    %v867 = vmul.f32 %v827, 0.044715
    %v868 = vmul.f32 %v841, 0.044715
    %v869 = vmul.f32 %v801, 0.044715
    %v870 = vmul.f32 %v815, 0.044715
    %v871 = vmul.f32 %v829, 0.044715
    %v872 = vmul.f32 %v843, 0.044715
    %v873 = vmul.f32 %v865, %v799
    %v874 = vmul.f32 %v866, %v813
    %v875 = vmul.f32 %v867, %v827
    %v876 = vmul.f32 %v868, %v841
    %v877 = vmul.f32 %v869, %v801
    %v878 = vmul.f32 %v870, %v815
    %v879 = vmul.f32 %v871, %v829
    %v880 = vmul.f32 %v872, %v843
    %v881 = vmul.f32 %v873, %v799
    %v882 = vmul.f32 %v874, %v813
    %v883 = vmul.f32 %v875, %v827
    %v884 = vmul.f32 %v876, %v841
    %v885 = vmul.f32 %v877, %v801
    %v886 = vmul.f32 %v878, %v815
    %v887 = vmul.f32 %v879, %v829
    %v888 = vmul.f32 %v880, %v843
    %v889 = vadd.f32 %v799, %v881
    %v890 = vadd.f32 %v813, %v882
    %v891 = vadd.f32 %v827, %v883
    %v892 = vadd.f32 %v841, %v884
    %v893 = vadd.f32 %v801, %v885
    %v894 = vadd.f32 %v815, %v886
    %v895 = vadd.f32 %v829, %v887
    %v896 = vadd.f32 %v843, %v888
    %v897 = vmul.f32 %v889, 0.7978846
    %v898 = vmul.f32 %v890, 0.7978846
    %v899 = vmul.f32 %v891, 0.7978846
    %v900 = vmul.f32 %v892, 0.7978846
    %v901 = vmul.f32 %v893, 0.7978846
    %v902 = vmul.f32 %v894, 0.7978846
    %v903 = vmul.f32 %v895, 0.7978846
    %v904 = vmul.f32 %v896, 0.7978846
    %v905 = vtanh.pop %v897
    %v906 = vtanh.pop %v898
    %v907 = vtanh.pop %v899
    %v908 = vtanh.pop %v900
    %v909 = vtanh.pop %v901
    %v910 = vtanh.pop %v902
    %v911 = vtanh.pop %v903
    %v912 = vtanh.pop %v904
    %v913 = vadd.f32 %v905, 1.0
    %v914 = vadd.f32 %v906, 1.0
    %v915 = vadd.f32 %v907, 1.0
    %v916 = vadd.f32 %v908, 1.0
    %v917 = vadd.f32 %v909, 1.0
    %v918 = vadd.f32 %v910, 1.0
    %v919 = vadd.f32 %v911, 1.0
    %v920 = vadd.f32 %v912, 1.0
    %v921 = vmul.f32 %v857, %v913
    %v922 = vmul.f32 %v858, %v914
    %v923 = vmul.f32 %v859, %v915
    %v924 = vmul.f32 %v860, %v916
    %v925 = vmul.f32 %v861, %v917
    %v926 = vmul.f32 %v862, %v918
    %v927 = vmul.f32 %v863, %v919
    %v928 = vmul.f32 %v864, %v920
    %v929 = vpack.c.bf16 %v925, %v921
    %v930 = vpack.c.bf16 %v926, %v922
    %v931 = vpack.c.bf16 %v927, %v923
    %v932 = vpack.c.bf16 %v928, %v924
    %v933 = vld [vmem:[#allocation11] sm:$0xf]
    %v934 = vld [vmem:[#allocation11 + $0x4] sm:$0xf]
    %v935 = vld [vmem:[#allocation11 + $0x8] sm:$0xf]
    %v936 = vld [vmem:[#allocation11 + $0xc] sm:$0xf]
    %v937 = vld [vmem:[#allocation11 + $0x10] sm:$0xf]
    %v938 = vld [vmem:[#allocation11 + $0x14] sm:$0xf]
    %v939 = vld [vmem:[#allocation11 + $0x18] sm:$0xf]
    %v940 = vld [vmem:[#allocation11 + $0x1c] sm:$0xf]
    %v941 = vld [vmem:[#allocation11 + $0x20] sm:$0xf]
    %v942 = vld [vmem:[#allocation11 + $0x24] sm:$0xf]
    %v943 = vld [vmem:[#allocation11 + $0x28] sm:$0xf]
    %v944 = vld [vmem:[#allocation11 + $0x2c] sm:$0xf]
    %v945 = vld [vmem:[#allocation11 + $0x30] sm:$0xf]
    %v946 = vld [vmem:[#allocation11 + $0x34] sm:$0xf]
    %v947 = vld [vmem:[#allocation11 + $0x38] sm:$0xf]
    %v948 = vld [vmem:[#allocation11 + $0x3c] sm:$0xf]
    %v949 = vld [vmem:[#allocation11 + $0x40] sm:$0xf]
    %v950 = vld [vmem:[#allocation11 + $0x44] sm:$0xf]
    %v951 = vld [vmem:[#allocation11 + $0x48] sm:$0xf]
    %v952 = vld [vmem:[#allocation11 + $0x4c] sm:$0xf]
    %v953 = vld [vmem:[#allocation11 + $0x50] sm:$0xf]
    %v954 = vld [vmem:[#allocation11 + $0x54] sm:$0xf]
    %v955 = vld [vmem:[#allocation11 + $0x58] sm:$0xf]
    %v956 = vld [vmem:[#allocation11 + $0x5c] sm:$0xf]
    %v957 = vld [vmem:[#allocation11 + $0x60] sm:$0xf]
    %v958 = vld [vmem:[#allocation11 + $0x64] sm:$0xf]
    %v959 = vld [vmem:[#allocation11 + $0x68] sm:$0xf]
    %v960 = vld [vmem:[#allocation11 + $0x6c] sm:$0xf]
    %v961 = vld [vmem:[#allocation11 + $0x70] sm:$0xf]
    %v962 = vld [vmem:[#allocation11 + $0x74] sm:$0xf]
    %v963 = vld [vmem:[#allocation11 + $0x78] sm:$0xf]
    %v964 = vld [vmem:[#allocation11 + $0x7c] sm:$0xf]
    %v965 = vld [vmem:[#allocation11 + $0x80] sm:$0xf]
    %v966 = vld [vmem:[#allocation11 + $0x84] sm:$0xf]
    %v967 = vld [vmem:[#allocation11 + $0x88] sm:$0xf]
    %v968 = vld [vmem:[#allocation11 + $0x8c] sm:$0xf]
    %v969 = vld [vmem:[#allocation11 + $0x90] sm:$0xf]
    %v970 = vld [vmem:[#allocation11 + $0x94] sm:$0xf]
    %v971 = vld [vmem:[#allocation11 + $0x98] sm:$0xf]
    %v972 = vld [vmem:[#allocation11 + $0x9c] sm:$0xf]
    %v973 = vld [vmem:[#allocation11 + $0xa0] sm:$0xf]
    %v974 = vld [vmem:[#allocation11 + $0xa4] sm:$0xf]
    %v975 = vld [vmem:[#allocation11 + $0xa8] sm:$0xf]
    %v976 = vld [vmem:[#allocation11 + $0xac] sm:$0xf]
    %v977 = vld [vmem:[#allocation11 + $0xb0] sm:$0xf]
    %v978 = vld [vmem:[#allocation11 + $0xb4] sm:$0xf]
    %v979 = vld [vmem:[#allocation11 + $0xb8] sm:$0xf]
    %v980 = vld [vmem:[#allocation11 + $0xbc] sm:$0xf]
    %v981 = vld [vmem:[#allocation11 + $0xc0] sm:$0xf]
    %v982 = vld [vmem:[#allocation11 + $0xc4] sm:$0xf]
    %v983 = vld [vmem:[#allocation11 + $0xc8] sm:$0xf]
    %v984 = vld [vmem:[#allocation11 + $0xcc] sm:$0xf]
    %v985 = vld [vmem:[#allocation11 + $0xd0] sm:$0xf]
    %v986 = vld [vmem:[#allocation11 + $0xd4] sm:$0xf]
    %v987 = vld [vmem:[#allocation11 + $0xd8] sm:$0xf]
    %v988 = vld [vmem:[#allocation11 + $0xdc] sm:$0xf]
    %v989 = vld [vmem:[#allocation11 + $0xe0] sm:$0xf]
    %v990 = vld [vmem:[#allocation11 + $0xe4] sm:$0xf]
    %v991 = vld [vmem:[#allocation11 + $0xe8] sm:$0xf]
    %v992 = vld [vmem:[#allocation11 + $0xec] sm:$0xf]
    %v993 = vld [vmem:[#allocation11 + $0xf0] sm:$0xf]
    %v994 = vld [vmem:[#allocation11 + $0xf4] sm:$0xf]
    %v995 = vld [vmem:[#allocation11 + $0xf8] sm:$0xf]
    %v996 = vld [vmem:[#allocation11 + $0xfc] sm:$0xf]
    %v997 = vld [vmem:[%s6] sm:$0x1]
    %v999 = vperm.slane %v997, 0
    %v1065 = vunpack.c.l.b16 %v933
    %v1066 = vunpack.c.l.b16 %v934
    %v1067 = vunpack.c.l.b16 %v935
    %v1068 = vunpack.c.l.b16 %v936
    %v1069 = vunpack.c.l.b16 %v937
    %v1070 = vunpack.c.l.b16 %v938
    %v1071 = vunpack.c.l.b16 %v939
    %v1072 = vunpack.c.l.b16 %v940
    %v1073 = vunpack.c.l.b16 %v941
    %v1074 = vunpack.c.l.b16 %v942
    %v1075 = vunpack.c.l.b16 %v943
    %v1076 = vunpack.c.l.b16 %v944
    %v1077 = vunpack.c.l.b16 %v945
    %v1078 = vunpack.c.l.b16 %v946
    %v1079 = vunpack.c.l.b16 %v947
    %v1080 = vunpack.c.l.b16 %v948
    %v1081 = vunpack.c.l.b16 %v949
    %v1082 = vunpack.c.l.b16 %v950
    %v1083 = vunpack.c.l.b16 %v951
    %v1084 = vunpack.c.l.b16 %v952
    %v1085 = vunpack.c.l.b16 %v953
    %v1086 = vunpack.c.l.b16 %v954
    %v1087 = vunpack.c.l.b16 %v955
    %v1088 = vunpack.c.l.b16 %v956
    %v1089 = vunpack.c.l.b16 %v957
    %v1090 = vunpack.c.l.b16 %v958
    %v1091 = vunpack.c.l.b16 %v959
    %v1092 = vunpack.c.l.b16 %v960
    %v1093 = vunpack.c.l.b16 %v961
    %v1094 = vunpack.c.l.b16 %v962
    %v1095 = vunpack.c.l.b16 %v963
    %v1096 = vunpack.c.l.b16 %v964
    %v1097 = vunpack.c.l.b16 %v965
    %v1098 = vunpack.c.l.b16 %v966
    %v1099 = vunpack.c.l.b16 %v967
    %v1100 = vunpack.c.l.b16 %v968
    %v1101 = vunpack.c.l.b16 %v969
    %v1102 = vunpack.c.l.b16 %v970
    %v1103 = vunpack.c.l.b16 %v971
    %v1104 = vunpack.c.l.b16 %v972
    %v1105 = vunpack.c.l.b16 %v973
    %v1106 = vunpack.c.l.b16 %v974
    %v1107 = vunpack.c.l.b16 %v975
    %v1108 = vunpack.c.l.b16 %v976
    %v1109 = vunpack.c.l.b16 %v977
    %v1110 = vunpack.c.l.b16 %v978
    %v1111 = vunpack.c.l.b16 %v979
    %v1112 = vunpack.c.l.b16 %v980
    %v1113 = vunpack.c.l.b16 %v981
    %v1114 = vunpack.c.l.b16 %v982
    %v1115 = vunpack.c.l.b16 %v983
    %v1116 = vunpack.c.l.b16 %v984
    %v1117 = vunpack.c.l.b16 %v985
    %v1118 = vunpack.c.l.b16 %v986
    %v1119 = vunpack.c.l.b16 %v987
    %v1120 = vunpack.c.l.b16 %v988
    %v1121 = vunpack.c.l.b16 %v989
    %v1122 = vunpack.c.l.b16 %v990
    %v1123 = vunpack.c.l.b16 %v991
    %v1124 = vunpack.c.l.b16 %v992
    %v1125 = vunpack.c.l.b16 %v993
    %v1126 = vunpack.c.l.b16 %v994
    %v1127 = vunpack.c.l.b16 %v995
    %v1128 = vunpack.c.l.b16 %v996
    %v1129 = vpack.c.b16 %v1066, %v1065
    %v1130 = vpack.c.b16 %v1068, %v1067
    %v1131 = vpack.c.b16 %v1070, %v1069
    %v1132 = vpack.c.b16 %v1072, %v1071
    %v1133 = vpack.c.b16 %v1074, %v1073
    %v1134 = vpack.c.b16 %v1076, %v1075
    %v1135 = vpack.c.b16 %v1078, %v1077
    %v1136 = vpack.c.b16 %v1080, %v1079
    %v1137 = vpack.c.b16 %v1082, %v1081
    %v1138 = vpack.c.b16 %v1084, %v1083
    %v1139 = vpack.c.b16 %v1086, %v1085
    %v1140 = vpack.c.b16 %v1088, %v1087
    %v1141 = vpack.c.b16 %v1090, %v1089
    %v1142 = vpack.c.b16 %v1092, %v1091
    %v1143 = vpack.c.b16 %v1094, %v1093
    %v1144 = vpack.c.b16 %v1096, %v1095
    %v1145 = vpack.c.b16 %v1098, %v1097
    %v1146 = vpack.c.b16 %v1100, %v1099
    %v1147 = vpack.c.b16 %v1102, %v1101
    %v1148 = vpack.c.b16 %v1104, %v1103
    %v1149 = vpack.c.b16 %v1106, %v1105
    %v1150 = vpack.c.b16 %v1108, %v1107
    %v1151 = vpack.c.b16 %v1110, %v1109
    %v1152 = vpack.c.b16 %v1112, %v1111
    %v1153 = vpack.c.b16 %v1114, %v1113
    %v1154 = vpack.c.b16 %v1116, %v1115
    %v1155 = vpack.c.b16 %v1118, %v1117
    %v1156 = vpack.c.b16 %v1120, %v1119
    %v1157 = vpack.c.b16 %v1122, %v1121
    %v1158 = vpack.c.b16 %v1124, %v1123
    %v1159 = vpack.c.b16 %v1126, %v1125
    %v1160 = vpack.c.b16 %v1128, %v1127
    %1193 = vmatpush.bf16.msra.mxu0 %v1136
    %1194 = vmatpush.bf16.msra.mxu0 %v1135
    %1195 = vmatpush.bf16.msra.mxu0 %v1134
    %1196 = vmatpush.bf16.msra.mxu0 %v1133
    %1197 = vmatpush.bf16.msra.mxu0 %v1132
    %1198 = vmatpush.bf16.msra.mxu0 %v1131
    %1199 = vmatpush.bf16.msra.mxu0 %v1130
    %1200 = vmatpush.bf16.msra.mxu0 %v1129
    %1201 = vmatmul.bf16.gmra.mxu0 %v929
    %v1202 = vpop.f32.mrf.mxu0
    %v1203 = vadd.f32 %v999, %v1202
    %v1204 = vpop.f32.mrf.mxu0
    %v1205 = vadd.f32 %v999, %v1204
    %1206 = vdwg.mxu0
    %1207 = vmatpush.bf16.msra.mxu0 %v1144
    %1208 = vmatpush.bf16.msra.mxu0 %v1143
    %1209 = vmatpush.bf16.msra.mxu0 %v1142
    %1210 = vmatpush.bf16.msra.mxu0 %v1141
    %1211 = vmatpush.bf16.msra.mxu0 %v1140
    %1212 = vmatpush.bf16.msra.mxu0 %v1139
    %1213 = vmatpush.bf16.msra.mxu0 %v1138
    %1214 = vmatpush.bf16.msra.mxu0 %v1137
    %1215 = vmatmul.bf16.gmra.mxu0 %v930
    %v1216 = vpop.f32.mrf.mxu0
    %v1217 = vadd.f32 %v1203, %v1216
    %v1218 = vpop.f32.mrf.mxu0
    %v1219 = vadd.f32 %v1205, %v1218
    %1220 = vdwg.mxu0
    %1221 = vmatpush.bf16.msra.mxu0 %v1152
    %1222 = vmatpush.bf16.msra.mxu0 %v1151
    %1223 = vmatpush.bf16.msra.mxu0 %v1150
    %1224 = vmatpush.bf16.msra.mxu0 %v1149
    %1225 = vmatpush.bf16.msra.mxu0 %v1148
    %1226 = vmatpush.bf16.msra.mxu0 %v1147
    %1227 = vmatpush.bf16.msra.mxu0 %v1146
    %1228 = vmatpush.bf16.msra.mxu0 %v1145
    %1229 = vmatmul.bf16.gmra.mxu0 %v931
    %v1230 = vpop.f32.mrf.mxu0
    %v1231 = vadd.f32 %v1217, %v1230
    %v1232 = vpop.f32.mrf.mxu0
    %v1233 = vadd.f32 %v1219, %v1232
    %1234 = vdwg.mxu0
    %1235 = vmatpush.bf16.msra.mxu0 %v1160
    %1236 = vmatpush.bf16.msra.mxu0 %v1159
    %1237 = vmatpush.bf16.msra.mxu0 %v1158
    %1238 = vmatpush.bf16.msra.mxu0 %v1157
    %1239 = vmatpush.bf16.msra.mxu0 %v1156
    %1240 = vmatpush.bf16.msra.mxu0 %v1155
    %1241 = vmatpush.bf16.msra.mxu0 %v1154
    %1242 = vmatpush.bf16.msra.mxu0 %v1153
    %1243 = vmatmul.bf16.gmra.mxu0 %v932
    %v1244 = vpop.f32.mrf.mxu0
    %v1245 = vadd.f32 %v1231, %v1244
    %v1246 = vpop.f32.mrf.mxu0
    %v1247 = vadd.f32 %v1233, %v1246
    %1248 = vdwg.mxu0
    %v1249 = vsub.f32 %v1245, %v1247
    %v1250 = vand.u32 2147483647, %v1249
    %v1251 = vadd.f32 %v1250, 0.0
    %v1252 = vadd.f32 %v582, %v1245
    %v1253 = vadd.f32 %v584, %v1247
    %v1254 = vpack.c.bf16 %v1253, %v1252
    %v1255 = vld [vmem:[#allocation13] sm:$0xff]
    %v1256 = vld [vmem:[#allocation13 + $0x8] sm:$0xff]
    %v1257 = vld [vmem:[#allocation13 + $0x10] sm:$0xff]
    %v1258 = vld [vmem:[#allocation13 + $0x18] sm:$0xff]
    %v1259 = vld [vmem:[#allocation13 + $0x20] sm:$0xff]
    %v1260 = vld [vmem:[#allocation13 + $0x28] sm:$0xff]
    %v1261 = vld [vmem:[#allocation13 + $0x30] sm:$0xff]
    %v1262 = vld [vmem:[#allocation13 + $0x38] sm:$0xff]
    %v1263 = vld [vmem:[#allocation13 + $0x40] sm:$0xff]
    %v1264 = vld [vmem:[#allocation13 + $0x48] sm:$0xff]
    %v1265 = vld [vmem:[#allocation13 + $0x50] sm:$0xff]
    %v1266 = vld [vmem:[#allocation13 + $0x58] sm:$0xff]
    %v1267 = vld [vmem:[#allocation13 + $0x60] sm:$0xff]
    %v1268 = vld [vmem:[#allocation13 + $0x68] sm:$0xff]
    %v1269 = vld [vmem:[#allocation13 + $0x70] sm:$0xff]
    %v1270 = vld [vmem:[#allocation13 + $0x78] sm:$0xff]
    %v1271 = vld [vmem:[#allocation13 + $0x80] sm:$0xff]
    %v1272 = vld [vmem:[#allocation13 + $0x88] sm:$0xff]
    %v1273 = vld [vmem:[#allocation13 + $0x90] sm:$0xff]
    %v1274 = vld [vmem:[#allocation13 + $0x98] sm:$0xff]
    %v1275 = vld [vmem:[#allocation13 + $0xa0] sm:$0xff]
    %v1276 = vld [vmem:[#allocation13 + $0xa8] sm:$0xff]
    %v1277 = vld [vmem:[#allocation13 + $0xb0] sm:$0xff]
    %v1278 = vld [vmem:[#allocation13 + $0xb8] sm:$0xff]
    %v1279 = vld [vmem:[#allocation13 + $0xc0] sm:$0xff]
    %v1280 = vld [vmem:[#allocation13 + $0xc8] sm:$0xff]
    %v1281 = vld [vmem:[#allocation13 + $0xd0] sm:$0xff]
    %v1282 = vld [vmem:[#allocation13 + $0xd8] sm:$0xff]
    %v1283 = vld [vmem:[#allocation13 + $0xe0] sm:$0xff]
    %v1284 = vld [vmem:[#allocation13 + $0xe8] sm:$0xff]
    %v1285 = vld [vmem:[#allocation13 + $0xf0] sm:$0xff]
    %v1286 = vld [vmem:[#allocation13 + $0xf8] sm:$0xff]
    %v1287 = vld [vmem:[%s8] sm:$0xf]
    %v1289 = vperm.slane %v1287, 0
    %v1290 = vperm.slane %v1287, 1
    %v1291 = vperm.slane %v1287, 2
    %v1292 = vperm.slane %v1287, 3
    %v1329 = vunpack.c.l.b16 %v1255
    %v1330 = vunpack.c.h.b16 %v1255
    %v1331 = vunpack.c.l.b16 %v1256
    %v1332 = vunpack.c.h.b16 %v1256
    %v1333 = vunpack.c.l.b16 %v1257
    %v1334 = vunpack.c.h.b16 %v1257
    %v1335 = vunpack.c.l.b16 %v1258
    %v1336 = vunpack.c.h.b16 %v1258
    %v1337 = vunpack.c.l.b16 %v1259
    %v1338 = vunpack.c.h.b16 %v1259
    %v1339 = vunpack.c.l.b16 %v1260
    %v1340 = vunpack.c.h.b16 %v1260
    %v1341 = vunpack.c.l.b16 %v1261
    %v1342 = vunpack.c.h.b16 %v1261
    %v1343 = vunpack.c.l.b16 %v1262
    %v1344 = vunpack.c.h.b16 %v1262
    %v1345 = vunpack.c.l.b16 %v1263
    %v1346 = vunpack.c.h.b16 %v1263
    %v1347 = vunpack.c.l.b16 %v1264
    %v1348 = vunpack.c.h.b16 %v1264
    %v1349 = vunpack.c.l.b16 %v1265
    %v1350 = vunpack.c.h.b16 %v1265
    %v1351 = vunpack.c.l.b16 %v1266
    %v1352 = vunpack.c.h.b16 %v1266
    %v1353 = vunpack.c.l.b16 %v1267
    %v1354 = vunpack.c.h.b16 %v1267
    %v1355 = vunpack.c.l.b16 %v1268
    %v1356 = vunpack.c.h.b16 %v1268
    %v1357 = vunpack.c.l.b16 %v1269
    %v1358 = vunpack.c.h.b16 %v1269
    %v1359 = vunpack.c.l.b16 %v1270
    %v1360 = vunpack.c.h.b16 %v1270
    %v1361 = vunpack.c.l.b16 %v1271
    %v1362 = vunpack.c.h.b16 %v1271
    %v1363 = vunpack.c.l.b16 %v1272
    %v1364 = vunpack.c.h.b16 %v1272
    %v1365 = vunpack.c.l.b16 %v1273
    %v1366 = vunpack.c.h.b16 %v1273
    %v1367 = vunpack.c.l.b16 %v1274
    %v1368 = vunpack.c.h.b16 %v1274
    %v1369 = vunpack.c.l.b16 %v1275
    %v1370 = vunpack.c.h.b16 %v1275
    %v1371 = vunpack.c.l.b16 %v1276
    %v1372 = vunpack.c.h.b16 %v1276
    %v1373 = vunpack.c.l.b16 %v1277
    %v1374 = vunpack.c.h.b16 %v1277
    %v1375 = vunpack.c.l.b16 %v1278
    %v1376 = vunpack.c.h.b16 %v1278
    %v1377 = vunpack.c.l.b16 %v1279
    %v1378 = vunpack.c.h.b16 %v1279
    %v1379 = vunpack.c.l.b16 %v1280
    %v1380 = vunpack.c.h.b16 %v1280
    %v1381 = vunpack.c.l.b16 %v1281
    %v1382 = vunpack.c.h.b16 %v1281
    %v1383 = vunpack.c.l.b16 %v1282
    %v1384 = vunpack.c.h.b16 %v1282
    %v1385 = vunpack.c.l.b16 %v1283
    %v1386 = vunpack.c.h.b16 %v1283
    %v1387 = vunpack.c.l.b16 %v1284
    %v1388 = vunpack.c.h.b16 %v1284
    %v1389 = vunpack.c.l.b16 %v1285
    %v1390 = vunpack.c.h.b16 %v1285
    %v1391 = vunpack.c.l.b16 %v1286
    %v1392 = vunpack.c.h.b16 %v1286
    %v1393 = vpack.c.b16 %v1333, %v1329
    %v1394 = vpack.c.b16 %v1334, %v1330
    %v1395 = vpack.c.b16 %v1335, %v1331
    %v1396 = vpack.c.b16 %v1336, %v1332
    %v1397 = vpack.c.b16 %v1341, %v1337
    %v1398 = vpack.c.b16 %v1342, %v1338
    %v1399 = vpack.c.b16 %v1343, %v1339
    %v1400 = vpack.c.b16 %v1344, %v1340
    %v1401 = vpack.c.b16 %v1349, %v1345
    %v1402 = vpack.c.b16 %v1350, %v1346
    %v1403 = vpack.c.b16 %v1351, %v1347
    %v1404 = vpack.c.b16 %v1352, %v1348
    %v1405 = vpack.c.b16 %v1357, %v1353
    %v1406 = vpack.c.b16 %v1358, %v1354
    %v1407 = vpack.c.b16 %v1359, %v1355
    %v1408 = vpack.c.b16 %v1360, %v1356
    %v1409 = vpack.c.b16 %v1365, %v1361
    %v1410 = vpack.c.b16 %v1366, %v1362
    %v1411 = vpack.c.b16 %v1367, %v1363
    %v1412 = vpack.c.b16 %v1368, %v1364
    %v1413 = vpack.c.b16 %v1373, %v1369
    %v1414 = vpack.c.b16 %v1374, %v1370
    %v1415 = vpack.c.b16 %v1375, %v1371
    %v1416 = vpack.c.b16 %v1376, %v1372
    %v1417 = vpack.c.b16 %v1381, %v1377
    %v1418 = vpack.c.b16 %v1382, %v1378
    %v1419 = vpack.c.b16 %v1383, %v1379
    %v1420 = vpack.c.b16 %v1384, %v1380
    %v1421 = vpack.c.b16 %v1389, %v1385
    %v1422 = vpack.c.b16 %v1390, %v1386
    %v1423 = vpack.c.b16 %v1391, %v1387
    %v1424 = vpack.c.b16 %v1392, %v1388
    %1457 = vmatpush.bf16.msra.mxu0 %v1421
    %1458 = vmatpush.bf16.msra.mxu0 %v1417
    %1459 = vmatpush.bf16.msra.mxu0 %v1413
    %1460 = vmatpush.bf16.msra.mxu0 %v1409
    %1461 = vmatpush.bf16.msra.mxu0 %v1405
    %1462 = vmatpush.bf16.msra.mxu0 %v1401
    %1463 = vmatpush.bf16.msra.mxu0 %v1397
    %1464 = vmatpush.bf16.msra.mxu0 %v1393
    %1465 = vmatmul.bf16.gmra.mxu0 %v1254
    %v1466 = vpop.f32.mrf.mxu0
    %v1467 = vadd.f32 %v1289, %v1466
    %v1468 = vpop.f32.mrf.mxu0
    %v1469 = vadd.f32 %v1289, %v1468
    %1470 = vdwg.mxu0
    %1471 = vmatpush.bf16.msra.mxu0 %v1422
    %1472 = vmatpush.bf16.msra.mxu0 %v1418
    %1473 = vmatpush.bf16.msra.mxu0 %v1414
    %1474 = vmatpush.bf16.msra.mxu0 %v1410
    %1475 = vmatpush.bf16.msra.mxu0 %v1406
    %1476 = vmatpush.bf16.msra.mxu0 %v1402
    %1477 = vmatpush.bf16.msra.mxu0 %v1398
    %1478 = vmatpush.bf16.msra.mxu0 %v1394
    %1479 = vmatmul.bf16.gmra.mxu0 %v1254
    %v1480 = vpop.f32.mrf.mxu0
    %v1481 = vadd.f32 %v1290, %v1480
    %v1482 = vpop.f32.mrf.mxu0
    %v1483 = vadd.f32 %v1290, %v1482
    %1484 = vdwg.mxu0
    %1485 = vmatpush.bf16.msra.mxu0 %v1423
    %1486 = vmatpush.bf16.msra.mxu0 %v1419
    %1487 = vmatpush.bf16.msra.mxu0 %v1415
    %1488 = vmatpush.bf16.msra.mxu0 %v1411
    %1489 = vmatpush.bf16.msra.mxu0 %v1407
    %1490 = vmatpush.bf16.msra.mxu0 %v1403
    %1491 = vmatpush.bf16.msra.mxu0 %v1399
    %1492 = vmatpush.bf16.msra.mxu0 %v1395
    %1493 = vmatmul.bf16.gmra.mxu0 %v1254
    %v1494 = vpop.f32.mrf.mxu0
    %v1495 = vadd.f32 %v1291, %v1494
    %v1496 = vpop.f32.mrf.mxu0
    %v1497 = vadd.f32 %v1291, %v1496
    %1498 = vdwg.mxu0
    %1499 = vmatpush.bf16.msra.mxu0 %v1424
    %1500 = vmatpush.bf16.msra.mxu0 %v1420
    %1501 = vmatpush.bf16.msra.mxu0 %v1416
    %1502 = vmatpush.bf16.msra.mxu0 %v1412
    %1503 = vmatpush.bf16.msra.mxu0 %v1408
    %1504 = vmatpush.bf16.msra.mxu0 %v1404
    %1505 = vmatpush.bf16.msra.mxu0 %v1400
    %1506 = vmatpush.bf16.msra.mxu0 %v1396
    %1507 = vmatmul.bf16.gmra.mxu0 %v1254
    %v1508 = vpop.f32.mrf.mxu0
    %v1509 = vadd.f32 %v1292, %v1508
    %v1510 = vpop.f32.mrf.mxu0
    %v1511 = vadd.f32 %v1292, %v1510
    %1512 = vdwg.mxu0
    %v1513 = vsub.f32 %v1467, %v1469
    %v1514 = vsub.f32 %v1481, %v1483
    %v1515 = vsub.f32 %v1495, %v1497
    %v1516 = vsub.f32 %v1509, %v1511
    %v1517 = vand.u32 2147483647, %v1513
    %v1518 = vand.u32 2147483647, %v1514
    %v1519 = vand.u32 2147483647, %v1515
    %v1520 = vand.u32 2147483647, %v1516
    %v1521 = vadd.f32 %v853, %v1517
    %v1522 = vadd.f32 %v854, %v1518
    %v1523 = vadd.f32 %v855, %v1519
    %v1524 = vadd.f32 %v856, %v1520
    %v1525 = vmul.f32 %v1467, 0.5
    %v1526 = vmul.f32 %v1481, 0.5
    %v1527 = vmul.f32 %v1495, 0.5
    %v1528 = vmul.f32 %v1509, 0.5
    %v1529 = vmul.f32 %v1469, 0.5
    %v1530 = vmul.f32 %v1483, 0.5
    %v1531 = vmul.f32 %v1497, 0.5
    %v1532 = vmul.f32 %v1511, 0.5
    %v1533 = vmul.f32 %v1467, 0.044715
    %v1534 = vmul.f32 %v1481, 0.044715
    %v1535 = vmul.f32 %v1495, 0.044715
    %v1536 = vmul.f32 %v1509, 0.044715
    %v1537 = vmul.f32 %v1469, 0.044715
    %v1538 = vmul.f32 %v1483, 0.044715
    %v1539 = vmul.f32 %v1497, 0.044715
    %v1540 = vmul.f32 %v1511, 0.044715
    %v1541 = vmul.f32 %v1533, %v1467
    %v1542 = vmul.f32 %v1534, %v1481
    %v1543 = vmul.f32 %v1535, %v1495
    %v1544 = vmul.f32 %v1536, %v1509
    %v1545 = vmul.f32 %v1537, %v1469
    %v1546 = vmul.f32 %v1538, %v1483
    %v1547 = vmul.f32 %v1539, %v1497
    %v1548 = vmul.f32 %v1540, %v1511
    %v1549 = vmul.f32 %v1541, %v1467
    %v1550 = vmul.f32 %v1542, %v1481
    %v1551 = vmul.f32 %v1543, %v1495
    %v1552 = vmul.f32 %v1544, %v1509
    %v1553 = vmul.f32 %v1545, %v1469
    %v1554 = vmul.f32 %v1546, %v1483
    %v1555 = vmul.f32 %v1547, %v1497
    %v1556 = vmul.f32 %v1548, %v1511
    %v1557 = vadd.f32 %v1467, %v1549
    %v1558 = vadd.f32 %v1481, %v1550
    %v1559 = vadd.f32 %v1495, %v1551
    %v1560 = vadd.f32 %v1509, %v1552
    %v1561 = vadd.f32 %v1469, %v1553
    %v1562 = vadd.f32 %v1483, %v1554
    %v1563 = vadd.f32 %v1497, %v1555
    %v1564 = vadd.f32 %v1511, %v1556
    %v1565 = vmul.f32 %v1557, 0.7978846
    %v1566 = vmul.f32 %v1558, 0.7978846
    %v1567 = vmul.f32 %v1559, 0.7978846
    %v1568 = vmul.f32 %v1560, 0.7978846
    %v1569 = vmul.f32 %v1561, 0.7978846
    %v1570 = vmul.f32 %v1562, 0.7978846
    %v1571 = vmul.f32 %v1563, 0.7978846
    %v1572 = vmul.f32 %v1564, 0.7978846
    %v1573 = vtanh.pop %v1565
    %v1574 = vtanh.pop %v1566
    %v1575 = vtanh.pop %v1567
    %v1576 = vtanh.pop %v1568
    %v1577 = vtanh.pop %v1569
    %v1578 = vtanh.pop %v1570
    %v1579 = vtanh.pop %v1571
    %v1580 = vtanh.pop %v1572
    %v1581 = vadd.f32 %v1573, 1.0
    %v1582 = vadd.f32 %v1574, 1.0
    %v1583 = vadd.f32 %v1575, 1.0
    %v1584 = vadd.f32 %v1576, 1.0
    %v1585 = vadd.f32 %v1577, 1.0
    %v1586 = vadd.f32 %v1578, 1.0
    %v1587 = vadd.f32 %v1579, 1.0
    %v1588 = vadd.f32 %v1580, 1.0
    %v1589 = vmul.f32 %v1525, %v1581
    %v1590 = vmul.f32 %v1526, %v1582
    %v1591 = vmul.f32 %v1527, %v1583
    %v1592 = vmul.f32 %v1528, %v1584
    %v1593 = vmul.f32 %v1529, %v1585
    %v1594 = vmul.f32 %v1530, %v1586
    %v1595 = vmul.f32 %v1531, %v1587
    %v1596 = vmul.f32 %v1532, %v1588
    %v1597 = vpack.c.bf16 %v1593, %v1589
    %v1598 = vpack.c.bf16 %v1594, %v1590
    %v1599 = vpack.c.bf16 %v1595, %v1591
    %v1600 = vpack.c.bf16 %v1596, %v1592
    %v1601 = vld [vmem:[#allocation14] sm:$0xf]
    %v1602 = vld [vmem:[#allocation14 + $0x4] sm:$0xf]
    %v1603 = vld [vmem:[#allocation14 + $0x8] sm:$0xf]
    %v1604 = vld [vmem:[#allocation14 + $0xc] sm:$0xf]
    %v1605 = vld [vmem:[#allocation14 + $0x10] sm:$0xf]
    %v1606 = vld [vmem:[#allocation14 + $0x14] sm:$0xf]
    %v1607 = vld [vmem:[#allocation14 + $0x18] sm:$0xf]
    %v1608 = vld [vmem:[#allocation14 + $0x1c] sm:$0xf]
    %v1609 = vld [vmem:[#allocation14 + $0x20] sm:$0xf]
    %v1610 = vld [vmem:[#allocation14 + $0x24] sm:$0xf]
    %v1611 = vld [vmem:[#allocation14 + $0x28] sm:$0xf]
    %v1612 = vld [vmem:[#allocation14 + $0x2c] sm:$0xf]
    %v1613 = vld [vmem:[#allocation14 + $0x30] sm:$0xf]
    %v1614 = vld [vmem:[#allocation14 + $0x34] sm:$0xf]
    %v1615 = vld [vmem:[#allocation14 + $0x38] sm:$0xf]
    %v1616 = vld [vmem:[#allocation14 + $0x3c] sm:$0xf]
    %v1617 = vld [vmem:[#allocation14 + $0x40] sm:$0xf]
    %v1618 = vld [vmem:[#allocation14 + $0x44] sm:$0xf]
    %v1619 = vld [vmem:[#allocation14 + $0x48] sm:$0xf]
    %v1620 = vld [vmem:[#allocation14 + $0x4c] sm:$0xf]
    %v1621 = vld [vmem:[#allocation14 + $0x50] sm:$0xf]
    %v1622 = vld [vmem:[#allocation14 + $0x54] sm:$0xf]
    %v1623 = vld [vmem:[#allocation14 + $0x58] sm:$0xf]
    %v1624 = vld [vmem:[#allocation14 + $0x5c] sm:$0xf]
    %v1625 = vld [vmem:[#allocation14 + $0x60] sm:$0xf]
    %v1626 = vld [vmem:[#allocation14 + $0x64] sm:$0xf]
    %v1627 = vld [vmem:[#allocation14 + $0x68] sm:$0xf]
    %v1628 = vld [vmem:[#allocation14 + $0x6c] sm:$0xf]
    %v1629 = vld [vmem:[#allocation14 + $0x70] sm:$0xf]
    %v1630 = vld [vmem:[#allocation14 + $0x74] sm:$0xf]
    %v1631 = vld [vmem:[#allocation14 + $0x78] sm:$0xf]
    %v1632 = vld [vmem:[#allocation14 + $0x7c] sm:$0xf]
    %v1633 = vld [vmem:[#allocation14 + $0x80] sm:$0xf]
    %v1634 = vld [vmem:[#allocation14 + $0x84] sm:$0xf]
    %v1635 = vld [vmem:[#allocation14 + $0x88] sm:$0xf]
    %v1636 = vld [vmem:[#allocation14 + $0x8c] sm:$0xf]
    %v1637 = vld [vmem:[#allocation14 + $0x90] sm:$0xf]
    %v1638 = vld [vmem:[#allocation14 + $0x94] sm:$0xf]
    %v1639 = vld [vmem:[#allocation14 + $0x98] sm:$0xf]
    %v1640 = vld [vmem:[#allocation14 + $0x9c] sm:$0xf]
    %v1641 = vld [vmem:[#allocation14 + $0xa0] sm:$0xf]
    %v1642 = vld [vmem:[#allocation14 + $0xa4] sm:$0xf]
    %v1643 = vld [vmem:[#allocation14 + $0xa8] sm:$0xf]
    %v1644 = vld [vmem:[#allocation14 + $0xac] sm:$0xf]
    %v1645 = vld [vmem:[#allocation14 + $0xb0] sm:$0xf]
    %v1646 = vld [vmem:[#allocation14 + $0xb4] sm:$0xf]
    %v1647 = vld [vmem:[#allocation14 + $0xb8] sm:$0xf]
    %v1648 = vld [vmem:[#allocation14 + $0xbc] sm:$0xf]
    %v1649 = vld [vmem:[#allocation14 + $0xc0] sm:$0xf]
    %v1650 = vld [vmem:[#allocation14 + $0xc4] sm:$0xf]
    %v1651 = vld [vmem:[#allocation14 + $0xc8] sm:$0xf]
    %v1652 = vld [vmem:[#allocation14 + $0xcc] sm:$0xf]
    %v1653 = vld [vmem:[#allocation14 + $0xd0] sm:$0xf]
    %v1654 = vld [vmem:[#allocation14 + $0xd4] sm:$0xf]
    %v1655 = vld [vmem:[#allocation14 + $0xd8] sm:$0xf]
    %v1656 = vld [vmem:[#allocation14 + $0xdc] sm:$0xf]
    %v1657 = vld [vmem:[#allocation14 + $0xe0] sm:$0xf]
    %v1658 = vld [vmem:[#allocation14 + $0xe4] sm:$0xf]
    %v1659 = vld [vmem:[#allocation14 + $0xe8] sm:$0xf]
    %v1660 = vld [vmem:[#allocation14 + $0xec] sm:$0xf]
    %v1661 = vld [vmem:[#allocation14 + $0xf0] sm:$0xf]
    %v1662 = vld [vmem:[#allocation14 + $0xf4] sm:$0xf]
    %v1663 = vld [vmem:[#allocation14 + $0xf8] sm:$0xf]
    %v1664 = vld [vmem:[#allocation14 + $0xfc] sm:$0xf]
    %v1665 = vld [vmem:[%s10] sm:$0x1]
    %v1667 = vperm.slane %v1665, 0
    %v1733 = vunpack.c.l.b16 %v1601
    %v1734 = vunpack.c.l.b16 %v1602
    %v1735 = vunpack.c.l.b16 %v1603
    %v1736 = vunpack.c.l.b16 %v1604
    %v1737 = vunpack.c.l.b16 %v1605
    %v1738 = vunpack.c.l.b16 %v1606
    %v1739 = vunpack.c.l.b16 %v1607
    %v1740 = vunpack.c.l.b16 %v1608
    %v1741 = vunpack.c.l.b16 %v1609
    %v1742 = vunpack.c.l.b16 %v1610
    %v1743 = vunpack.c.l.b16 %v1611
    %v1744 = vunpack.c.l.b16 %v1612
    %v1745 = vunpack.c.l.b16 %v1613
    %v1746 = vunpack.c.l.b16 %v1614
    %v1747 = vunpack.c.l.b16 %v1615
    %v1748 = vunpack.c.l.b16 %v1616
    %v1749 = vunpack.c.l.b16 %v1617
    %v1750 = vunpack.c.l.b16 %v1618
    %v1751 = vunpack.c.l.b16 %v1619
    %v1752 = vunpack.c.l.b16 %v1620
    %v1753 = vunpack.c.l.b16 %v1621
    %v1754 = vunpack.c.l.b16 %v1622
    %v1755 = vunpack.c.l.b16 %v1623
    %v1756 = vunpack.c.l.b16 %v1624
    %v1757 = vunpack.c.l.b16 %v1625
    %v1758 = vunpack.c.l.b16 %v1626
    %v1759 = vunpack.c.l.b16 %v1627
    %v1760 = vunpack.c.l.b16 %v1628
    %v1761 = vunpack.c.l.b16 %v1629
    %v1762 = vunpack.c.l.b16 %v1630
    %v1763 = vunpack.c.l.b16 %v1631
    %v1764 = vunpack.c.l.b16 %v1632
    %v1765 = vunpack.c.l.b16 %v1633
    %v1766 = vunpack.c.l.b16 %v1634
    %v1767 = vunpack.c.l.b16 %v1635
    %v1768 = vunpack.c.l.b16 %v1636
    %v1769 = vunpack.c.l.b16 %v1637
    %v1770 = vunpack.c.l.b16 %v1638
    %v1771 = vunpack.c.l.b16 %v1639
    %v1772 = vunpack.c.l.b16 %v1640
    %v1773 = vunpack.c.l.b16 %v1641
    %v1774 = vunpack.c.l.b16 %v1642
    %v1775 = vunpack.c.l.b16 %v1643
    %v1776 = vunpack.c.l.b16 %v1644
    %v1777 = vunpack.c.l.b16 %v1645
    %v1778 = vunpack.c.l.b16 %v1646
    %v1779 = vunpack.c.l.b16 %v1647
    %v1780 = vunpack.c.l.b16 %v1648
    %v1781 = vunpack.c.l.b16 %v1649
    %v1782 = vunpack.c.l.b16 %v1650
    %v1783 = vunpack.c.l.b16 %v1651
    %v1784 = vunpack.c.l.b16 %v1652
    %v1785 = vunpack.c.l.b16 %v1653
    %v1786 = vunpack.c.l.b16 %v1654
    %v1787 = vunpack.c.l.b16 %v1655
    %v1788 = vunpack.c.l.b16 %v1656
    %v1789 = vunpack.c.l.b16 %v1657
    %v1790 = vunpack.c.l.b16 %v1658
    %v1791 = vunpack.c.l.b16 %v1659
    %v1792 = vunpack.c.l.b16 %v1660
    %v1793 = vunpack.c.l.b16 %v1661
    %v1794 = vunpack.c.l.b16 %v1662
    %v1795 = vunpack.c.l.b16 %v1663
    %v1796 = vunpack.c.l.b16 %v1664
    %v1797 = vpack.c.b16 %v1734, %v1733
    %v1798 = vpack.c.b16 %v1736, %v1735
    %v1799 = vpack.c.b16 %v1738, %v1737
    %v1800 = vpack.c.b16 %v1740, %v1739
    %v1801 = vpack.c.b16 %v1742, %v1741
    %v1802 = vpack.c.b16 %v1744, %v1743
    %v1803 = vpack.c.b16 %v1746, %v1745
    %v1804 = vpack.c.b16 %v1748, %v1747
    %v1805 = vpack.c.b16 %v1750, %v1749
    %v1806 = vpack.c.b16 %v1752, %v1751
    %v1807 = vpack.c.b16 %v1754, %v1753
    %v1808 = vpack.c.b16 %v1756, %v1755
    %v1809 = vpack.c.b16 %v1758, %v1757
    %v1810 = vpack.c.b16 %v1760, %v1759
    %v1811 = vpack.c.b16 %v1762, %v1761
    %v1812 = vpack.c.b16 %v1764, %v1763
    %v1813 = vpack.c.b16 %v1766, %v1765
    %v1814 = vpack.c.b16 %v1768, %v1767
    %v1815 = vpack.c.b16 %v1770, %v1769
    %v1816 = vpack.c.b16 %v1772, %v1771
    %v1817 = vpack.c.b16 %v1774, %v1773
    %v1818 = vpack.c.b16 %v1776, %v1775
    %v1819 = vpack.c.b16 %v1778, %v1777
    %v1820 = vpack.c.b16 %v1780, %v1779
    %v1821 = vpack.c.b16 %v1782, %v1781
    %v1822 = vpack.c.b16 %v1784, %v1783
    %v1823 = vpack.c.b16 %v1786, %v1785
    %v1824 = vpack.c.b16 %v1788, %v1787
    %v1825 = vpack.c.b16 %v1790, %v1789
    %v1826 = vpack.c.b16 %v1792, %v1791
    %v1827 = vpack.c.b16 %v1794, %v1793
    %v1828 = vpack.c.b16 %v1796, %v1795
    %1861 = vmatpush.bf16.msra.mxu0 %v1804
    %1862 = vmatpush.bf16.msra.mxu0 %v1803
    %1863 = vmatpush.bf16.msra.mxu0 %v1802
    %1864 = vmatpush.bf16.msra.mxu0 %v1801
    %1865 = vmatpush.bf16.msra.mxu0 %v1800
    %1866 = vmatpush.bf16.msra.mxu0 %v1799
    %1867 = vmatpush.bf16.msra.mxu0 %v1798
    %1868 = vmatpush.bf16.msra.mxu0 %v1797
    %1869 = vmatmul.bf16.gmra.mxu0 %v1597
    %v1870 = vpop.f32.mrf.mxu0
    %v1871 = vadd.f32 %v1667, %v1870
    %v1872 = vpop.f32.mrf.mxu0
    %v1873 = vadd.f32 %v1667, %v1872
    %1874 = vdwg.mxu0
    %1875 = vmatpush.bf16.msra.mxu0 %v1812
    %1876 = vmatpush.bf16.msra.mxu0 %v1811
    %1877 = vmatpush.bf16.msra.mxu0 %v1810
    %1878 = vmatpush.bf16.msra.mxu0 %v1809
    %1879 = vmatpush.bf16.msra.mxu0 %v1808
    %1880 = vmatpush.bf16.msra.mxu0 %v1807
    %1881 = vmatpush.bf16.msra.mxu0 %v1806
    %1882 = vmatpush.bf16.msra.mxu0 %v1805
    %1883 = vmatmul.bf16.gmra.mxu0 %v1598
    %v1884 = vpop.f32.mrf.mxu0
    %v1885 = vadd.f32 %v1871, %v1884
    %v1886 = vpop.f32.mrf.mxu0
    %v1887 = vadd.f32 %v1873, %v1886
    %1888 = vdwg.mxu0
    %1889 = vmatpush.bf16.msra.mxu0 %v1820
    %1890 = vmatpush.bf16.msra.mxu0 %v1819
    %1891 = vmatpush.bf16.msra.mxu0 %v1818
    %1892 = vmatpush.bf16.msra.mxu0 %v1817
    %1893 = vmatpush.bf16.msra.mxu0 %v1816
    %1894 = vmatpush.bf16.msra.mxu0 %v1815
    %1895 = vmatpush.bf16.msra.mxu0 %v1814
    %1896 = vmatpush.bf16.msra.mxu0 %v1813
    %1897 = vmatmul.bf16.gmra.mxu0 %v1599
    %v1898 = vpop.f32.mrf.mxu0
    %v1899 = vadd.f32 %v1885, %v1898
    %v1900 = vpop.f32.mrf.mxu0
    %v1901 = vadd.f32 %v1887, %v1900
    %1902 = vdwg.mxu0
    %1903 = vmatpush.bf16.msra.mxu0 %v1828
    %1904 = vmatpush.bf16.msra.mxu0 %v1827
    %1905 = vmatpush.bf16.msra.mxu0 %v1826
    %1906 = vmatpush.bf16.msra.mxu0 %v1825
    %1907 = vmatpush.bf16.msra.mxu0 %v1824
    %1908 = vmatpush.bf16.msra.mxu0 %v1823
    %1909 = vmatpush.bf16.msra.mxu0 %v1822
    %1910 = vmatpush.bf16.msra.mxu0 %v1821
    %1911 = vmatmul.bf16.gmra.mxu0 %v1600
    %v1912 = vpop.f32.mrf.mxu0
    %v1913 = vadd.f32 %v1899, %v1912
    %v1914 = vpop.f32.mrf.mxu0
    %v1915 = vadd.f32 %v1901, %v1914
    %1916 = vdwg.mxu0
    %v1917 = vsub.f32 %v1913, %v1915
    %v1918 = vand.u32 2147483647, %v1917
    %v1919 = vadd.f32 %v1251, %v1918
    %v1920 = vadd.f32 %v1521, %v1522
    %v1921 = vadd.f32 %v1920, %v1523
    %v1922 = vadd.f32 %v1921, %v1524
    %1923 = vadd.xlane.f32.xlu0 %v1922
    %v1924 = vpop.xlane.xlu0 %1923
    %v1925 = vrot.slane %v1924, 4
    %v1926 = vadd.f32 %v1924, %v1925
    %v1927 = vrot.slane %v1926, 2
    %v1928 = vadd.f32 %v1926, %v1927
    %v1929 = vrot.slane %v1928, 1
    %v1930 = vadd.f32 %v1928, %v1929
    %s1931 = vtos %v1930
    %s1932 = smul.f32 %s1931, 0.00024414063
    %1933 = vadd.xlane.f32.xlu0 %v1919
    %v1934 = vpop.xlane.xlu0 %1933
    %v1935 = vrot.slane %v1934, 4
    %v1936 = vadd.f32 %v1934, %v1935
    %v1937 = vrot.slane %v1936, 2
    %v1938 = vadd.f32 %v1936, %v1937
    %v1939 = vrot.slane %v1938, 1
    %v1940 = vadd.f32 %v1938, %v1939
    %s1941 = vtos %v1940
    %s1942 = smul.f32 %s1941, 0.0009765625
    %s1943 = sadd.f32 %s1932, %s1942
    %s1944 = scalar_lea.smem [#allocation16], 0
    %1945 = sst [smem:[%s1944]] %s1943
    // Predicated region
    $region78: #{tpu_custom_call.1} parent=1 // pred_check
      _
    $region79: #{tpu_custom_call.1} parent=1 // pred_check_branch
      %1947 = sbr.rel (0) target = $region81
    $region80: #{tpu_custom_call.1} parent=1 // pred_region
      %1949 = vsyncadd [#allocation4], 0
      %s1951 = sshll.u32 %s11, 4
      %s1952 = int_to_ptr.hbm [resolvable:$true] %s1951
      %1954 = dma.smem_to_hbm [#allocation16], 16, %s1952, [#allocation4]
    $region81: #{tpu_custom_call.1} parent=1 // pred_fallthru
      _
    // Predicated region
    $region82: #{tpu_custom_call.1} parent=1 // pred_check
      _
    $region83: #{tpu_custom_call.1} parent=1 // pred_check_branch
      %1956 = sbr.rel (0) target = $region85
    $region84: #{tpu_custom_call.1} parent=1 // pred_region
      %1958 = dma.done [#allocation4], 16
    $region85: #{tpu_custom_call.1} parent=1 // pred_fallthru
      _
    %1959 = sfence
    %1960 = vsyncpa [#allocation3], 1
    %1961 = vsyncpa [#allocation6], 1
    %1962 = vsyncpa [#allocation9], 1
    %1963 = vsyncpa [#allocation12], 1
    %1964 = vsyncpa [#allocation15], 1
    %1965 = vsyncpa [#allocation4], 1

</llo_original>
